<compile_context>
chip_gen: v5e
topology: v5e:2x2
jax: 0.10.0
libtpu: 0.0.40
codegen_flags: <defaults>
</compile_context>

<pallas_src>
import jax
import jax.numpy as jnp
import numpy as np
from jax.experimental import pallas as pl
from jax.experimental.pallas import tpu as pltpu

# Hyperparameters (small, consistent with the module's __init__).
NUM_ELEMS = 8     # num_elems
NUM_ATTRS = 4     # num_attrs
VOCAB = 16        # vocab_size (== output_embedding_dim because of Onehotify)
MAX_LEN = 8       # max_len
HIDDEN = 32       # hidden_size
BATCH = 8

GATES = 4 * HIDDEN                 # 128
CAT = GATES + VOCAB                # 144 : fused [w_hh | w_out] width

# Packed-parameter slab layout: (ROWS, COLS) f32, every band 8-row aligned.
R_WIN = 0                          # (32, 32)   w_in
R_WCAT = 32                        # (32, 144)  [w_hh | w_out]
R_WIH = 64                         # (16, 128)  w_ih
R_BCAT = 80                        # (1, 144)   [b_ih + b_hh | b_out]
R_BIN = 88                         # (1, 32)    b_in
R_SOS = 96                         # (1, 128)   sos @ w_ih
ROWS = 104
COLS = CAT                         # 144


def _sender_kernel(x_ref, p_ref, logits_ref, seq_ref):
    B = x_ref.shape[0]
    A, E, H, V, L = NUM_ATTRS, NUM_ELEMS, HIDDEN, VOCAB, MAX_LEN
    G, C = GATES, CAT

    # ---- carve the packed parameter slab (static slices) ----
    w_in = p_ref[R_WIN:R_WIN + A * E, 0:H]                              # (32, 32) f32
    w_cat = p_ref[R_WCAT:R_WCAT + H, 0:C].astype(jnp.bfloat16)          # (32, 144) bf16
    w_ih = p_ref[R_WIH:R_WIH + V, 0:G]                                  # (16, 128) f32
    b_cat = p_ref[R_BCAT:R_BCAT + 1, 0:C]                               # (1, 144)
    b_in = p_ref[R_BIN:R_BIN + 1, 0:H]                                  # (1, 32)
    sos_g = p_ref[R_SOS:R_SOS + 1, 0:G]                                 # (1, 128) = sos @ w_ih

    # ---- initial hidden: input_linear(one_hot(x).reshape(B, A*E)) ----
    xi = x_ref[...]                                                     # (B, A) int32
    col_iota = jax.lax.broadcasted_iota(jnp.int32, (B, A * E), 1)
    onehot = jnp.zeros((B, A * E), jnp.float32)
    for a in range(A):                                                  # static, A is tiny
        onehot = onehot + (col_iota == (xi[:, a:a + 1] + a * E)).astype(jnp.float32)
    h = jnp.dot(onehot, w_in, preferred_element_type=jnp.float32) + b_in    # (B, H)
    c = jnp.zeros((B, H), jnp.float32)                                  # LSTM c0

    iota_v = jax.lax.broadcasted_iota(jnp.int32, (B, V), 1)
    rows = [w_ih[v:v + 1, :] for v in range(V)]                         # 16 x (1, 128)

    # emb_0 = sos_embedding -> its W_ih contribution was precomputed at pack time.
    gates_in = jnp.broadcast_to(sos_g, (B, G))                          # (B, 128)

    # Fused matmul of h_{t-1}: [:, :128] = h@w_hh + b_gates, [:, 128:] = h@w_out + b_out.
    cat = jnp.dot(h.astype(jnp.bfloat16), w_cat,
                  preferred_element_type=jnp.float32) + b_cat           # (B, 144)

    for t in range(L):                                                  # fully unrolled decode
        # Single-layer LSTM step, PyTorch gate order (i, f, g, o).
        gates = gates_in + cat[:, 0:G]                                  # (B, 128)
        sig = jax.nn.sigmoid(gates)                                     # full-width EUP pass
        tnh = jnp.tanh(gates)
        i_g = sig[:, 0 * H:1 * H]
        f_g = sig[:, 1 * H:2 * H]
        g_g = tnh[:, 2 * H:3 * H]
        o_g = sig[:, 3 * H:4 * H]
        c = f_g * c + i_g * g_g
        h = o_g * jnp.tanh(c)

        # Fused [w_hh | w_out] matmul of the new h (bf16 MXU, f32 accumulation).
        cat = jnp.dot(h.astype(jnp.bfloat16), w_cat,
                      preferred_element_type=jnp.float32) + b_cat       # (B, 144)
        logits_step = cat[:, G:C]                                       # (B, V) = output_linear(h)
        logits_ref[:, t * V:(t + 1) * V] = logits_step

        # Greedy symbol (eval mode): first index of the max (== torch argmax).
        m = jnp.max(logits_step, axis=-1, keepdims=True)
        sym = jnp.min(jnp.where(logits_step == m, iota_v, V),
                      axis=-1, keepdims=True)                           # (B, 1) int32
        seq_ref[:, t:t + 1] = sym

        # Next-step input contribution: one_hot(sym) @ w_ih == w_ih[sym].
        # Binary select tree over the 16 rows driven by the bits of sym (no MXU).
        if t + 1 < L:
            b0 = (sym & 1) != 0
            b1 = (sym & 2) != 0
            b2 = (sym & 4) != 0
            b3 = (sym & 8) != 0
            l1 = [jnp.where(b0, rows[2 * j + 1], rows[2 * j]) for j in range(8)]
            l2 = [jnp.where(b1, l1[2 * j + 1], l1[2 * j]) for j in range(4)]
            l3 = [jnp.where(b2, l2[2 * j + 1], l2[2 * j]) for j in range(2)]
            gates_in = jnp.where(b3, l3[1], l3[0])                      # (B, 128)


def pack_params(params):
    """Build the single (ROWS, COLS) f32 parameter slab once at init time."""
    b_gates = params["b_ih"] + params["b_hh"]                           # fold gate biases
    w_cat = jnp.concatenate([params["w_hh"], params["w_out"]], axis=1)  # (32, 144)
    b_cat = jnp.concatenate([b_gates, params["b_out"]], axis=1)         # (1, 144)
    sos_gates = params["sos"] @ params["w_ih"]                          # (1, 128)

    P = jnp.zeros((ROWS, COLS), jnp.float32)
    P = P.at[R_WIN:R_WIN + NUM_ATTRS * NUM_ELEMS, 0:HIDDEN].set(params["w_in"])
    P = P.at[R_WCAT:R_WCAT + HIDDEN, 0:CAT].set(w_cat)
    P = P.at[R_WIH:R_WIH + VOCAB, 0:GATES].set(params["w_ih"])
    P = P.at[R_BCAT, 0:CAT].set(b_cat[0])
    P = P.at[R_BIN, 0:HIDDEN].set(params["b_in"][0])
    P = P.at[R_SOS, 0:GATES].set(sos_gates[0])
    return P


def discrete_sender_forward(x, packed_params):
    """x: (batch, num_attrs) int32. Returns (sequence (B, L) int32, logits (B, L, V) f32)."""
    B, _ = x.shape

    # Advisory cost estimate: tiny, latency-bound custom call.
    flops = (2 * B * (NUM_ATTRS * NUM_ELEMS) * HIDDEN
             + 2 * (MAX_LEN + 1) * B * HIDDEN * CAT)
    transcendentals = MAX_LEN * B * (2 * GATES + HIDDEN)
    bytes_accessed = (ROWS * COLS * 4 + B * NUM_ATTRS * 4
                      + B * MAX_LEN * VOCAB * 4 + B * MAX_LEN * 4)

    vmem = lambda: pl.BlockSpec(memory_space=pltpu.MemorySpace.VMEM)
    logits_flat, sequence = pl.pallas_call(
        _sender_kernel,
        out_shape=(jax.ShapeDtypeStruct((B, MAX_LEN * VOCAB), jnp.float32),
                   jax.ShapeDtypeStruct((B, MAX_LEN), jnp.int32)),
        in_specs=[vmem(), vmem()],
        out_specs=(vmem(), vmem()),
        cost_estimate=pl.CostEstimate(flops=flops,
                                      transcendentals=transcendentals,
                                      bytes_accessed=bytes_accessed),
    )(x, packed_params)

    logits = logits_flat.reshape(B, MAX_LEN, VOCAB)                     # (B, max_len, vocab)
    return sequence, logits


def init_params(key):
    ks = jax.random.split(key, 9)
    s = 0.5
    return {
        "w_in":  s * jax.random.normal(ks[0], (NUM_ATTRS * NUM_ELEMS, HIDDEN), jnp.float32),
        "b_in":  s * jax.random.normal(ks[1], (1, HIDDEN), jnp.float32),
        "w_ih":  s * jax.random.normal(ks[2], (VOCAB, 4 * HIDDEN), jnp.float32),
        "b_ih":  s * jax.random.normal(ks[3], (1, 4 * HIDDEN), jnp.float32),
        "w_hh":  s * jax.random.normal(ks[4], (HIDDEN, 4 * HIDDEN), jnp.float32),
        "b_hh":  s * jax.random.normal(ks[5], (1, 4 * HIDDEN), jnp.float32),
        "w_out": s * jax.random.normal(ks[6], (HIDDEN, VOCAB), jnp.float32),
        "b_out": s * jax.random.normal(ks[7], (1, VOCAB), jnp.float32),
        "sos":   jax.random.normal(ks[8], (1, VOCAB), jnp.float32),     # sos_embedding
    }


def reference_forward(x, p):
    """Pure-JAX reference with the same math as the kernel (incl. bf16 MXU operands)."""
    B = x.shape[0]
    H, V, L = HIDDEN, VOCAB, MAX_LEN
    one_hot = jax.nn.one_hot(x, NUM_ELEMS, dtype=jnp.float32).reshape(B, -1)
    h = one_hot @ p["w_in"] + p["b_in"]
    c = jnp.zeros_like(h)
    w_cat = jnp.concatenate([p["w_hh"], p["w_out"]], axis=1).astype(jnp.bfloat16)
    b_cat = jnp.concatenate([p["b_ih"] + p["b_hh"], p["b_out"]], axis=1)
    gates_in = jnp.broadcast_to(p["sos"] @ p["w_ih"], (B, 4 * H))

    def fused(hv):
        return jnp.dot(hv.astype(jnp.bfloat16), w_cat,
                       preferred_element_type=jnp.float32) + b_cat

    cat = fused(h)
    seqs, logs = [], []
    for _ in range(L):
        gates = gates_in + cat[:, :4 * H]
        i_g = jax.nn.sigmoid(gates[:, :H])
        f_g = jax.nn.sigmoid(gates[:, H:2 * H])
        g_g = jnp.tanh(gates[:, 2 * H:3 * H])
        o_g = jax.nn.sigmoid(gates[:, 3 * H:])
        c = f_g * c + i_g * g_g
        h = o_g * jnp.tanh(c)
        cat = fused(h)
        lg = cat[:, 4 * H:]
        sym = jnp.argmax(lg, axis=-1).astype(jnp.int32)
        gates_in = p["w_ih"][sym]                # == one_hot(sym) @ w_ih
        seqs.append(sym[:, None])
        logs.append(lg[:, None, :])
    return jnp.concatenate(seqs, 1), jnp.concatenate(logs, 1)


if __name__ == "__main__":
    key = jax.random.PRNGKey(0)
    k_param, k_x = jax.random.split(key)
    params = init_params(k_param)
    packed = pack_params(params)                 # built once at init, reused every call
    x = jax.random.randint(k_x, (BATCH, NUM_ATTRS), 0, NUM_ELEMS, dtype=jnp.int32)

    fwd = jax.jit(discrete_sender_forward)
    sequence, logits = jax.block_until_ready(fwd(x, packed))

    assert sequence.shape == (BATCH, MAX_LEN) and sequence.dtype == jnp.int32
    assert logits.shape == (BATCH, MAX_LEN, VOCAB) and logits.dtype == jnp.float32

    # Light correctness check against a pure-JAX reference using the identical math
    # (first decode step, to stay independent of tiny MXU/EUP-vs-XLA differences).
    ref_seq, ref_logits = reference_forward(x, params)
    np.testing.assert_allclose(np.asarray(logits[:, 0, :]),
                               np.asarray(ref_logits[:, 0, :]),
                               rtol=5e-2, atol=5e-2)
    np.testing.assert_array_equal(np.asarray(sequence[:, 0]), np.asarray(ref_seq[:, 0]))

    print("KERNEL_OK")
</pallas_src>

<mosaic_0001>
module attributes {stable_mosaic.version = 11 : i64} {
  func.func @_sender_kernel(%arg0: memref<8x4xi32, #tpu.memory_space<vmem>>, %arg1: memref<104x144xf32, #tpu.memory_space<vmem>>, %arg2: memref<8x128xf32, #tpu.memory_space<vmem>>, %arg3: memref<8x8xi32, #tpu.memory_space<vmem>>) attributes {dimension_semantics = [], scalar_prefetch = 0 : i64, scratch_operands = 0 : i64, tpu.core_type = #tpu.core_type<tc>} {
    %c0 = arith.constant 0 : index
    %c0_0 = arith.constant 0 : index
    %0 = vector.load %arg1[%c0, %c0_0] : memref<104x144xf32, #tpu.memory_space<vmem>>, vector<32x32xf32>
    %c32 = arith.constant 32 : index
    %c0_1 = arith.constant 0 : index
    %1 = vector.load %arg1[%c32, %c0_1] : memref<104x144xf32, #tpu.memory_space<vmem>>, vector<32x144xf32>
    %2 = arith.truncf %1 : vector<32x144xf32> to vector<32x144xbf16>
    %c64 = arith.constant 64 : index
    %c0_2 = arith.constant 0 : index
    %3 = vector.load %arg1[%c64, %c0_2] : memref<104x144xf32, #tpu.memory_space<vmem>>, vector<16x128xf32>
    %c80 = arith.constant 80 : index
    %c0_3 = arith.constant 0 : index
    %4 = vector.load %arg1[%c80, %c0_3] : memref<104x144xf32, #tpu.memory_space<vmem>>, vector<1x144xf32>
    %c88 = arith.constant 88 : index
    %c0_4 = arith.constant 0 : index
    %5 = vector.load %arg1[%c88, %c0_4] : memref<104x144xf32, #tpu.memory_space<vmem>>, vector<1x32xf32>
    %c96 = arith.constant 96 : index
    %c0_5 = arith.constant 0 : index
    %6 = vector.load %arg1[%c96, %c0_5] : memref<104x144xf32, #tpu.memory_space<vmem>>, vector<1x128xf32>
    %c0_6 = arith.constant 0 : index
    %c0_7 = arith.constant 0 : index
    %7 = vector.load %arg0[%c0_6, %c0_7] : memref<8x4xi32, #tpu.memory_space<vmem>>, vector<8x4xi32>
    %8 = tpu.iota {dimensions = array<i32: 1>} : vector<8x32xi32>
    %cst = arith.constant 0.000000e+00 : f32
    %9 = vector.broadcast %cst : f32 to vector<8x32xf32>
    %10 = vector.extract_strided_slice %7 {offsets = [0, 0], sizes = [8, 1], strides = [1, 1]} : vector<8x4xi32> to vector<8x1xi32>
    %c0_i32 = arith.constant 0 : i32
    %11 = vector.broadcast %c0_i32 : i32 to vector<8x1xi32>
    %12 = arith.addi %10, %11 : vector<8x1xi32>
    %13 = vector.broadcast %12 : vector<8x1xi32> to vector<8x32xi32>
    %14 = arith.cmpi eq, %8, %13 : vector<8x32xi32>
    %15 = arith.extui %14 : vector<8x32xi1> to vector<8x32xi32>
    %16 = arith.sitofp %15 : vector<8x32xi32> to vector<8x32xf32>
    %17 = arith.addf %9, %16 : vector<8x32xf32>
    %18 = vector.extract_strided_slice %7 {offsets = [0, 1], sizes = [8, 1], strides = [1, 1]} : vector<8x4xi32> to vector<8x1xi32>
    %c8_i32 = arith.constant 8 : i32
    %19 = vector.broadcast %c8_i32 : i32 to vector<8x1xi32>
    %20 = arith.addi %18, %19 : vector<8x1xi32>
    %21 = vector.broadcast %20 : vector<8x1xi32> to vector<8x32xi32>
    %22 = arith.cmpi eq, %8, %21 : vector<8x32xi32>
    %23 = arith.extui %22 : vector<8x32xi1> to vector<8x32xi32>
    %24 = arith.sitofp %23 : vector<8x32xi32> to vector<8x32xf32>
    %25 = arith.addf %17, %24 : vector<8x32xf32>
    %26 = vector.extract_strided_slice %7 {offsets = [0, 2], sizes = [8, 1], strides = [1, 1]} : vector<8x4xi32> to vector<8x1xi32>
    %c16_i32 = arith.constant 16 : i32
    %27 = vector.broadcast %c16_i32 : i32 to vector<8x1xi32>
    %28 = arith.addi %26, %27 : vector<8x1xi32>
    %29 = vector.broadcast %28 : vector<8x1xi32> to vector<8x32xi32>
    %30 = arith.cmpi eq, %8, %29 : vector<8x32xi32>
    %31 = arith.extui %30 : vector<8x32xi1> to vector<8x32xi32>
    %32 = arith.sitofp %31 : vector<8x32xi32> to vector<8x32xf32>
    %33 = arith.addf %25, %32 : vector<8x32xf32>
    %34 = vector.extract_strided_slice %7 {offsets = [0, 3], sizes = [8, 1], strides = [1, 1]} : vector<8x4xi32> to vector<8x1xi32>
    %c24_i32 = arith.constant 24 : i32
    %35 = vector.broadcast %c24_i32 : i32 to vector<8x1xi32>
    %36 = arith.addi %34, %35 : vector<8x1xi32>
    %37 = vector.broadcast %36 : vector<8x1xi32> to vector<8x32xi32>
    %38 = arith.cmpi eq, %8, %37 : vector<8x32xi32>
    %39 = arith.extui %38 : vector<8x32xi1> to vector<8x32xi32>
    %40 = arith.sitofp %39 : vector<8x32xi32> to vector<8x32xf32>
    %41 = arith.addf %33, %40 : vector<8x32xf32>
    %cst_8 = arith.constant dense<0.000000e+00> : vector<8x32xf32>
    %42 = tpu.matmul %41, %0, %cst_8 {dimension_numbers = #tpu.dot_dimension_numbers<[1], [0], [0], [1], [0, 0, 1, 1], [], []>} : vector<8x32xf32>, vector<32x32xf32>, vector<8x32xf32> -> vector<8x32xf32>
    %43 = vector.broadcast %5 : vector<1x32xf32> to vector<8x32xf32>
    %44 = arith.addf %42, %43 : vector<8x32xf32>
    %cst_9 = arith.constant 0.000000e+00 : f32
    %45 = vector.broadcast %cst_9 : f32 to vector<8x32xf32>
    %46 = tpu.iota {dimensions = array<i32: 1>} : vector<8x16xi32>
    %47 = vector.extract_strided_slice %3 {offsets = [0, 0], sizes = [1, 128], strides = [1, 1]} : vector<16x128xf32> to vector<1x128xf32>
    %48 = vector.extract_strided_slice %3 {offsets = [1, 0], sizes = [1, 128], strides = [1, 1]} : vector<16x128xf32> to vector<1x128xf32>
    %49 = vector.extract_strided_slice %3 {offsets = [2, 0], sizes = [1, 128], strides = [1, 1]} : vector<16x128xf32> to vector<1x128xf32>
    %50 = vector.extract_strided_slice %3 {offsets = [3, 0], sizes = [1, 128], strides = [1, 1]} : vector<16x128xf32> to vector<1x128xf32>
    %51 = vector.extract_strided_slice %3 {offsets = [4, 0], sizes = [1, 128], strides = [1, 1]} : vector<16x128xf32> to vector<1x128xf32>
    %52 = vector.extract_strided_slice %3 {offsets = [5, 0], sizes = [1, 128], strides = [1, 1]} : vector<16x128xf32> to vector<1x128xf32>
    %53 = vector.extract_strided_slice %3 {offsets = [6, 0], sizes = [1, 128], strides = [1, 1]} : vector<16x128xf32> to vector<1x128xf32>
    %54 = vector.extract_strided_slice %3 {offsets = [7, 0], sizes = [1, 128], strides = [1, 1]} : vector<16x128xf32> to vector<1x128xf32>
    %55 = vector.extract_strided_slice %3 {offsets = [8, 0], sizes = [1, 128], strides = [1, 1]} : vector<16x128xf32> to vector<1x128xf32>
    %56 = vector.extract_strided_slice %3 {offsets = [9, 0], sizes = [1, 128], strides = [1, 1]} : vector<16x128xf32> to vector<1x128xf32>
    %57 = vector.extract_strided_slice %3 {offsets = [10, 0], sizes = [1, 128], strides = [1, 1]} : vector<16x128xf32> to vector<1x128xf32>
    %58 = vector.extract_strided_slice %3 {offsets = [11, 0], sizes = [1, 128], strides = [1, 1]} : vector<16x128xf32> to vector<1x128xf32>
    %59 = vector.extract_strided_slice %3 {offsets = [12, 0], sizes = [1, 128], strides = [1, 1]} : vector<16x128xf32> to vector<1x128xf32>
    %60 = vector.extract_strided_slice %3 {offsets = [13, 0], sizes = [1, 128], strides = [1, 1]} : vector<16x128xf32> to vector<1x128xf32>
    %61 = vector.extract_strided_slice %3 {offsets = [14, 0], sizes = [1, 128], strides = [1, 1]} : vector<16x128xf32> to vector<1x128xf32>
    %62 = vector.extract_strided_slice %3 {offsets = [15, 0], sizes = [1, 128], strides = [1, 1]} : vector<16x128xf32> to vector<1x128xf32>
    %63 = vector.shape_cast %6 : vector<1x128xf32> to vector<1x128xf32>
    %64 = vector.broadcast %63 : vector<1x128xf32> to vector<8x128xf32>
    %65 = arith.truncf %44 : vector<8x32xf32> to vector<8x32xbf16>
    %cst_10 = arith.constant dense<0.000000e+00> : vector<8x144xf32>
    %66 = tpu.matmul %65, %2, %cst_10 {dimension_numbers = #tpu.dot_dimension_numbers<[1], [0], [0], [1], [0, 0, 1, 1], [], []>} : vector<8x32xbf16>, vector<32x144xbf16>, vector<8x144xf32> -> vector<8x144xf32>
    %67 = vector.broadcast %4 : vector<1x144xf32> to vector<8x144xf32>
    %68 = arith.addf %66, %67 : vector<8x144xf32>
    %69 = vector.extract_strided_slice %68 {offsets = [0, 0], sizes = [8, 128], strides = [1, 1]} : vector<8x144xf32> to vector<8x128xf32>
    %70 = arith.addf %64, %69 : vector<8x128xf32>
    %71 = arith.negf %70 : vector<8x128xf32>
    %72 = math.exp %71 : vector<8x128xf32>
    %cst_11 = arith.constant 1.000000e+00 : f32
    %73 = vector.broadcast %cst_11 : f32 to vector<8x128xf32>
    %74 = arith.addf %73, %72 : vector<8x128xf32>
    %75 = arith.divf %73, %74 : vector<8x128xf32>
    %76 = math.tanh %70 : vector<8x128xf32>
    %77 = vector.extract_strided_slice %75 {offsets = [0, 0], sizes = [8, 32], strides = [1, 1]} : vector<8x128xf32> to vector<8x32xf32>
    %78 = vector.extract_strided_slice %75 {offsets = [0, 32], sizes = [8, 32], strides = [1, 1]} : vector<8x128xf32> to vector<8x32xf32>
    %79 = vector.extract_strided_slice %76 {offsets = [0, 64], sizes = [8, 32], strides = [1, 1]} : vector<8x128xf32> to vector<8x32xf32>
    %80 = vector.extract_strided_slice %75 {offsets = [0, 96], sizes = [8, 32], strides = [1, 1]} : vector<8x128xf32> to vector<8x32xf32>
    %81 = arith.mulf %78, %45 : vector<8x32xf32>
    %82 = arith.mulf %77, %79 : vector<8x32xf32>
    %83 = arith.addf %81, %82 : vector<8x32xf32>
    %84 = math.tanh %83 : vector<8x32xf32>
    %85 = arith.mulf %80, %84 : vector<8x32xf32>
    %86 = arith.truncf %85 : vector<8x32xf32> to vector<8x32xbf16>
    %cst_12 = arith.constant dense<0.000000e+00> : vector<8x144xf32>
    %87 = tpu.matmul %86, %2, %cst_12 {dimension_numbers = #tpu.dot_dimension_numbers<[1], [0], [0], [1], [0, 0, 1, 1], [], []>} : vector<8x32xbf16>, vector<32x144xbf16>, vector<8x144xf32> -> vector<8x144xf32>
    %88 = vector.broadcast %4 : vector<1x144xf32> to vector<8x144xf32>
    %89 = arith.addf %87, %88 : vector<8x144xf32>
    %90 = vector.extract_strided_slice %89 {offsets = [0, 128], sizes = [8, 16], strides = [1, 1]} : vector<8x144xf32> to vector<8x16xf32>
    %c0_13 = arith.constant 0 : index
    %c0_14 = arith.constant 0 : index
    %91 = vector.load %arg2[%c0_13, %c0_14] : memref<8x128xf32, #tpu.memory_space<vmem>>, vector<8x16xf32>
    tpu.vector_store %arg2[%c0_13, %c0_14], %90 {strides = array<i32>} : memref<8x128xf32, #tpu.memory_space<vmem>>, vector<8x16xf32>,
    %cst_15 = arith.constant dense<0xFF800000> : vector<8xf32>
    %92 = vector.multi_reduction <maximumf>, %90, %cst_15 [1] : vector<8x16xf32> to vector<8xf32>
    %93 = vector.shape_cast %92 : vector<8xf32> to vector<8x1xf32>
    %94 = vector.broadcast %93 : vector<8x1xf32> to vector<8x16xf32>
    %95 = arith.cmpf oeq, %90, %94 : vector<8x16xf32>
    %c16_i32_16 = arith.constant 16 : i32
    %96 = vector.broadcast %c16_i32_16 : i32 to vector<8x16xi32>
    %97 = arith.select %95, %46, %96 : vector<8x16xi1>, vector<8x16xi32>
    %cst_17 = arith.constant dense<2147483647> : vector<8xi32>
    %98 = vector.multi_reduction <minsi>, %97, %cst_17 [1] : vector<8x16xi32> to vector<8xi32>
    %99 = vector.shape_cast %98 : vector<8xi32> to vector<8x1xi32>
    %c0_18 = arith.constant 0 : index
    %c0_19 = arith.constant 0 : index
    %100 = vector.load %arg3[%c0_18, %c0_19] : memref<8x8xi32, #tpu.memory_space<vmem>>, vector<8x1xi32>
    tpu.vector_store %arg3[%c0_18, %c0_19], %99 {strides = array<i32>} : memref<8x8xi32, #tpu.memory_space<vmem>>, vector<8x1xi32>,
    %c1_i32 = arith.constant 1 : i32
    %101 = vector.broadcast %c1_i32 : i32 to vector<8x1xi32>
    %102 = arith.andi %99, %101 : vector<8x1xi32>
    %c0_i32_20 = arith.constant 0 : i32
    %103 = vector.broadcast %c0_i32_20 : i32 to vector<8x1xi32>
    %104 = arith.cmpi ne, %102, %103 : vector<8x1xi32>
    %c2_i32 = arith.constant 2 : i32
    %105 = vector.broadcast %c2_i32 : i32 to vector<8x1xi32>
    %106 = arith.andi %99, %105 : vector<8x1xi32>
    %c0_i32_21 = arith.constant 0 : i32
    %107 = vector.broadcast %c0_i32_21 : i32 to vector<8x1xi32>
    %108 = arith.cmpi ne, %106, %107 : vector<8x1xi32>
    %c4_i32 = arith.constant 4 : i32
    %109 = vector.broadcast %c4_i32 : i32 to vector<8x1xi32>
    %110 = arith.andi %99, %109 : vector<8x1xi32>
    %c0_i32_22 = arith.constant 0 : i32
    %111 = vector.broadcast %c0_i32_22 : i32 to vector<8x1xi32>
    %112 = arith.cmpi ne, %110, %111 : vector<8x1xi32>
    %c8_i32_23 = arith.constant 8 : i32
    %113 = vector.broadcast %c8_i32_23 : i32 to vector<8x1xi32>
    %114 = arith.andi %99, %113 : vector<8x1xi32>
    %c0_i32_24 = arith.constant 0 : i32
    %115 = vector.broadcast %c0_i32_24 : i32 to vector<8x1xi32>
    %116 = arith.cmpi ne, %114, %115 : vector<8x1xi32>
    %117 = vector.shape_cast %104 : vector<8x1xi1> to vector<8x1xi1>
    %118 = vector.broadcast %117 : vector<8x1xi1> to vector<8x128xi1>
    %119 = vector.shape_cast %48 : vector<1x128xf32> to vector<1x128xf32>
    %120 = vector.broadcast %119 : vector<1x128xf32> to vector<8x128xf32>
    %121 = vector.shape_cast %47 : vector<1x128xf32> to vector<1x128xf32>
    %122 = vector.broadcast %121 : vector<1x128xf32> to vector<8x128xf32>
    %123 = arith.select %118, %120, %122 : vector<8x128xi1>, vector<8x128xf32>
    %124 = vector.shape_cast %104 : vector<8x1xi1> to vector<8x1xi1>
    %125 = vector.broadcast %124 : vector<8x1xi1> to vector<8x128xi1>
    %126 = vector.shape_cast %50 : vector<1x128xf32> to vector<1x128xf32>
    %127 = vector.broadcast %126 : vector<1x128xf32> to vector<8x128xf32>
    %128 = vector.shape_cast %49 : vector<1x128xf32> to vector<1x128xf32>
    %129 = vector.broadcast %128 : vector<1x128xf32> to vector<8x128xf32>
    %130 = arith.select %125, %127, %129 : vector<8x128xi1>, vector<8x128xf32>
    %131 = vector.shape_cast %104 : vector<8x1xi1> to vector<8x1xi1>
    %132 = vector.broadcast %131 : vector<8x1xi1> to vector<8x128xi1>
    %133 = vector.shape_cast %52 : vector<1x128xf32> to vector<1x128xf32>
    %134 = vector.broadcast %133 : vector<1x128xf32> to vector<8x128xf32>
    %135 = vector.shape_cast %51 : vector<1x128xf32> to vector<1x128xf32>
    %136 = vector.broadcast %135 : vector<1x128xf32> to vector<8x128xf32>
    %137 = arith.select %132, %134, %136 : vector<8x128xi1>, vector<8x128xf32>
    %138 = vector.shape_cast %104 : vector<8x1xi1> to vector<8x1xi1>
    %139 = vector.broadcast %138 : vector<8x1xi1> to vector<8x128xi1>
    %140 = vector.shape_cast %54 : vector<1x128xf32> to vector<1x128xf32>
    %141 = vector.broadcast %140 : vector<1x128xf32> to vector<8x128xf32>
    %142 = vector.shape_cast %53 : vector<1x128xf32> to vector<1x128xf32>
    %143 = vector.broadcast %142 : vector<1x128xf32> to vector<8x128xf32>
    %144 = arith.select %139, %141, %143 : vector<8x128xi1>, vector<8x128xf32>
    %145 = vector.shape_cast %104 : vector<8x1xi1> to vector<8x1xi1>
    %146 = vector.broadcast %145 : vector<8x1xi1> to vector<8x128xi1>
    %147 = vector.shape_cast %56 : vector<1x128xf32> to vector<1x128xf32>
    %148 = vector.broadcast %147 : vector<1x128xf32> to vector<8x128xf32>
    %149 = vector.shape_cast %55 : vector<1x128xf32> to vector<1x128xf32>
    %150 = vector.broadcast %149 : vector<1x128xf32> to vector<8x128xf32>
    %151 = arith.select %146, %148, %150 : vector<8x128xi1>, vector<8x128xf32>
    %152 = vector.shape_cast %104 : vector<8x1xi1> to vector<8x1xi1>
    %153 = vector.broadcast %152 : vector<8x1xi1> to vector<8x128xi1>
    %154 = vector.shape_cast %58 : vector<1x128xf32> to vector<1x128xf32>
    %155 = vector.broadcast %154 : vector<1x128xf32> to vector<8x128xf32>
    %156 = vector.shape_cast %57 : vector<1x128xf32> to vector<1x128xf32>
    %157 = vector.broadcast %156 : vector<1x128xf32> to vector<8x128xf32>
    %158 = arith.select %153, %155, %157 : vector<8x128xi1>, vector<8x128xf32>
    %159 = vector.shape_cast %104 : vector<8x1xi1> to vector<8x1xi1>
    %160 = vector.broadcast %159 : vector<8x1xi1> to vector<8x128xi1>
    %161 = vector.shape_cast %60 : vector<1x128xf32> to vector<1x128xf32>
    %162 = vector.broadcast %161 : vector<1x128xf32> to vector<8x128xf32>
    %163 = vector.shape_cast %59 : vector<1x128xf32> to vector<1x128xf32>
    %164 = vector.broadcast %163 : vector<1x128xf32> to vector<8x128xf32>
    %165 = arith.select %160, %162, %164 : vector<8x128xi1>, vector<8x128xf32>
    %166 = vector.shape_cast %104 : vector<8x1xi1> to vector<8x1xi1>
    %167 = vector.broadcast %166 : vector<8x1xi1> to vector<8x128xi1>
    %168 = vector.shape_cast %62 : vector<1x128xf32> to vector<1x128xf32>
    %169 = vector.broadcast %168 : vector<1x128xf32> to vector<8x128xf32>
    %170 = vector.shape_cast %61 : vector<1x128xf32> to vector<1x128xf32>
    %171 = vector.broadcast %170 : vector<1x128xf32> to vector<8x128xf32>
    %172 = arith.select %167, %169, %171 : vector<8x128xi1>, vector<8x128xf32>
    %173 = vector.shape_cast %108 : vector<8x1xi1> to vector<8x1xi1>
    %174 = vector.broadcast %173 : vector<8x1xi1> to vector<8x128xi1>
    %175 = arith.select %174, %130, %123 : vector<8x128xi1>, vector<8x128xf32>
    %176 = vector.shape_cast %108 : vector<8x1xi1> to vector<8x1xi1>
    %177 = vector.broadcast %176 : vector<8x1xi1> to vector<8x128xi1>
    %178 = arith.select %177, %144, %137 : vector<8x128xi1>, vector<8x128xf32>
    %179 = vector.shape_cast %108 : vector<8x1xi1> to vector<8x1xi1>
    %180 = vector.broadcast %179 : vector<8x1xi1> to vector<8x128xi1>
    %181 = arith.select %180, %158, %151 : vector<8x128xi1>, vector<8x128xf32>
    %182 = vector.shape_cast %108 : vector<8x1xi1> to vector<8x1xi1>
    %183 = vector.broadcast %182 : vector<8x1xi1> to vector<8x128xi1>
    %184 = arith.select %183, %172, %165 : vector<8x128xi1>, vector<8x128xf32>
    %185 = vector.shape_cast %112 : vector<8x1xi1> to vector<8x1xi1>
    %186 = vector.broadcast %185 : vector<8x1xi1> to vector<8x128xi1>
    %187 = arith.select %186, %178, %175 : vector<8x128xi1>, vector<8x128xf32>
    %188 = vector.shape_cast %112 : vector<8x1xi1> to vector<8x1xi1>
    %189 = vector.broadcast %188 : vector<8x1xi1> to vector<8x128xi1>
    %190 = arith.select %189, %184, %181 : vector<8x128xi1>, vector<8x128xf32>
    %191 = vector.shape_cast %116 : vector<8x1xi1> to vector<8x1xi1>
    %192 = vector.broadcast %191 : vector<8x1xi1> to vector<8x128xi1>
    %193 = arith.select %192, %190, %187 : vector<8x128xi1>, vector<8x128xf32>
    %194 = vector.extract_strided_slice %89 {offsets = [0, 0], sizes = [8, 128], strides = [1, 1]} : vector<8x144xf32> to vector<8x128xf32>
    %195 = arith.addf %193, %194 : vector<8x128xf32>
    %196 = arith.negf %195 : vector<8x128xf32>
    %197 = math.exp %196 : vector<8x128xf32>
    %cst_25 = arith.constant 1.000000e+00 : f32
    %198 = vector.broadcast %cst_25 : f32 to vector<8x128xf32>
    %199 = arith.addf %198, %197 : vector<8x128xf32>
    %200 = arith.divf %198, %199 : vector<8x128xf32>
    %201 = math.tanh %195 : vector<8x128xf32>
    %202 = vector.extract_strided_slice %200 {offsets = [0, 0], sizes = [8, 32], strides = [1, 1]} : vector<8x128xf32> to vector<8x32xf32>
    %203 = vector.extract_strided_slice %200 {offsets = [0, 32], sizes = [8, 32], strides = [1, 1]} : vector<8x128xf32> to vector<8x32xf32>
    %204 = vector.extract_strided_slice %201 {offsets = [0, 64], sizes = [8, 32], strides = [1, 1]} : vector<8x128xf32> to vector<8x32xf32>
    %205 = vector.extract_strided_slice %200 {offsets = [0, 96], sizes = [8, 32], strides = [1, 1]} : vector<8x128xf32> to vector<8x32xf32>
    %206 = arith.mulf %203, %83 : vector<8x32xf32>
    %207 = arith.mulf %202, %204 : vector<8x32xf32>
    %208 = arith.addf %206, %207 : vector<8x32xf32>
    %209 = math.tanh %208 : vector<8x32xf32>
    %210 = arith.mulf %205, %209 : vector<8x32xf32>
    %211 = arith.truncf %210 : vector<8x32xf32> to vector<8x32xbf16>
    %cst_26 = arith.constant dense<0.000000e+00> : vector<8x144xf32>
    %212 = tpu.matmul %211, %2, %cst_26 {dimension_numbers = #tpu.dot_dimension_numbers<[1], [0], [0], [1], [0, 0, 1, 1], [], []>} : vector<8x32xbf16>, vector<32x144xbf16>, vector<8x144xf32> -> vector<8x144xf32>
    %213 = vector.broadcast %4 : vector<1x144xf32> to vector<8x144xf32>
    %214 = arith.addf %212, %213 : vector<8x144xf32>
    %215 = vector.extract_strided_slice %214 {offsets = [0, 128], sizes = [8, 16], strides = [1, 1]} : vector<8x144xf32> to vector<8x16xf32>
    %c0_27 = arith.constant 0 : index
    %c16 = arith.constant 16 : index
    %216 = vector.load %arg2[%c0_27, %c16] : memref<8x128xf32, #tpu.memory_space<vmem>>, vector<8x16xf32>
    tpu.vector_store %arg2[%c0_27, %c16], %215 {strides = array<i32>} : memref<8x128xf32, #tpu.memory_space<vmem>>, vector<8x16xf32>,
    %cst_28 = arith.constant dense<0xFF800000> : vector<8xf32>
    %217 = vector.multi_reduction <maximumf>, %215, %cst_28 [1] : vector<8x16xf32> to vector<8xf32>
    %218 = vector.shape_cast %217 : vector<8xf32> to vector<8x1xf32>
    %219 = vector.broadcast %218 : vector<8x1xf32> to vector<8x16xf32>
    %220 = arith.cmpf oeq, %215, %219 : vector<8x16xf32>
    %c16_i32_29 = arith.constant 16 : i32
    %221 = vector.broadcast %c16_i32_29 : i32 to vector<8x16xi32>
    %222 = arith.select %220, %46, %221 : vector<8x16xi1>, vector<8x16xi32>
    %cst_30 = arith.constant dense<2147483647> : vector<8xi32>
    %223 = vector.multi_reduction <minsi>, %222, %cst_30 [1] : vector<8x16xi32> to vector<8xi32>
    %224 = vector.shape_cast %223 : vector<8xi32> to vector<8x1xi32>
    %c0_31 = arith.constant 0 : index
    %c1 = arith.constant 1 : index
    %225 = vector.load %arg3[%c0_31, %c1] : memref<8x8xi32, #tpu.memory_space<vmem>>, vector<8x1xi32>
    tpu.vector_store %arg3[%c0_31, %c1], %224 {strides = array<i32>} : memref<8x8xi32, #tpu.memory_space<vmem>>, vector<8x1xi32>,
    %c1_i32_32 = arith.constant 1 : i32
    %226 = vector.broadcast %c1_i32_32 : i32 to vector<8x1xi32>
    %227 = arith.andi %224, %226 : vector<8x1xi32>
    %c0_i32_33 = arith.constant 0 : i32
    %228 = vector.broadcast %c0_i32_33 : i32 to vector<8x1xi32>
    %229 = arith.cmpi ne, %227, %228 : vector<8x1xi32>
    %c2_i32_34 = arith.constant 2 : i32
    %230 = vector.broadcast %c2_i32_34 : i32 to vector<8x1xi32>
    %231 = arith.andi %224, %230 : vector<8x1xi32>
    %c0_i32_35 = arith.constant 0 : i32
    %232 = vector.broadcast %c0_i32_35 : i32 to vector<8x1xi32>
    %233 = arith.cmpi ne, %231, %232 : vector<8x1xi32>
    %c4_i32_36 = arith.constant 4 : i32
    %234 = vector.broadcast %c4_i32_36 : i32 to vector<8x1xi32>
    %235 = arith.andi %224, %234 : vector<8x1xi32>
    %c0_i32_37 = arith.constant 0 : i32
    %236 = vector.broadcast %c0_i32_37 : i32 to vector<8x1xi32>
    %237 = arith.cmpi ne, %235, %236 : vector<8x1xi32>
    %c8_i32_38 = arith.constant 8 : i32
    %238 = vector.broadcast %c8_i32_38 : i32 to vector<8x1xi32>
    %239 = arith.andi %224, %238 : vector<8x1xi32>
    %c0_i32_39 = arith.constant 0 : i32
    %240 = vector.broadcast %c0_i32_39 : i32 to vector<8x1xi32>
    %241 = arith.cmpi ne, %239, %240 : vector<8x1xi32>
    %242 = vector.shape_cast %229 : vector<8x1xi1> to vector<8x1xi1>
    %243 = vector.broadcast %242 : vector<8x1xi1> to vector<8x128xi1>
    %244 = vector.shape_cast %48 : vector<1x128xf32> to vector<1x128xf32>
    %245 = vector.broadcast %244 : vector<1x128xf32> to vector<8x128xf32>
    %246 = vector.shape_cast %47 : vector<1x128xf32> to vector<1x128xf32>
    %247 = vector.broadcast %246 : vector<1x128xf32> to vector<8x128xf32>
    %248 = arith.select %243, %245, %247 : vector<8x128xi1>, vector<8x128xf32>
    %249 = vector.shape_cast %229 : vector<8x1xi1> to vector<8x1xi1>
    %250 = vector.broadcast %249 : vector<8x1xi1> to vector<8x128xi1>
    %251 = vector.shape_cast %50 : vector<1x128xf32> to vector<1x128xf32>
    %252 = vector.broadcast %251 : vector<1x128xf32> to vector<8x128xf32>
    %253 = vector.shape_cast %49 : vector<1x128xf32> to vector<1x128xf32>
    %254 = vector.broadcast %253 : vector<1x128xf32> to vector<8x128xf32>
    %255 = arith.select %250, %252, %254 : vector<8x128xi1>, vector<8x128xf32>
    %256 = vector.shape_cast %229 : vector<8x1xi1> to vector<8x1xi1>
    %257 = vector.broadcast %256 : vector<8x1xi1> to vector<8x128xi1>
    %258 = vector.shape_cast %52 : vector<1x128xf32> to vector<1x128xf32>
    %259 = vector.broadcast %258 : vector<1x128xf32> to vector<8x128xf32>
    %260 = vector.shape_cast %51 : vector<1x128xf32> to vector<1x128xf32>
    %261 = vector.broadcast %260 : vector<1x128xf32> to vector<8x128xf32>
    %262 = arith.select %257, %259, %261 : vector<8x128xi1>, vector<8x128xf32>
    %263 = vector.shape_cast %229 : vector<8x1xi1> to vector<8x1xi1>
    %264 = vector.broadcast %263 : vector<8x1xi1> to vector<8x128xi1>
    %265 = vector.shape_cast %54 : vector<1x128xf32> to vector<1x128xf32>
    %266 = vector.broadcast %265 : vector<1x128xf32> to vector<8x128xf32>
    %267 = vector.shape_cast %53 : vector<1x128xf32> to vector<1x128xf32>
    %268 = vector.broadcast %267 : vector<1x128xf32> to vector<8x128xf32>
    %269 = arith.select %264, %266, %268 : vector<8x128xi1>, vector<8x128xf32>
    %270 = vector.shape_cast %229 : vector<8x1xi1> to vector<8x1xi1>
    %271 = vector.broadcast %270 : vector<8x1xi1> to vector<8x128xi1>
    %272 = vector.shape_cast %56 : vector<1x128xf32> to vector<1x128xf32>
    %273 = vector.broadcast %272 : vector<1x128xf32> to vector<8x128xf32>
    %274 = vector.shape_cast %55 : vector<1x128xf32> to vector<1x128xf32>
    %275 = vector.broadcast %274 : vector<1x128xf32> to vector<8x128xf32>
    %276 = arith.select %271, %273, %275 : vector<8x128xi1>, vector<8x128xf32>
    %277 = vector.shape_cast %229 : vector<8x1xi1> to vector<8x1xi1>
    %278 = vector.broadcast %277 : vector<8x1xi1> to vector<8x128xi1>
    %279 = vector.shape_cast %58 : vector<1x128xf32> to vector<1x128xf32>
    %280 = vector.broadcast %279 : vector<1x128xf32> to vector<8x128xf32>
    %281 = vector.shape_cast %57 : vector<1x128xf32> to vector<1x128xf32>
    %282 = vector.broadcast %281 : vector<1x128xf32> to vector<8x128xf32>
    %283 = arith.select %278, %280, %282 : vector<8x128xi1>, vector<8x128xf32>
    %284 = vector.shape_cast %229 : vector<8x1xi1> to vector<8x1xi1>
    %285 = vector.broadcast %284 : vector<8x1xi1> to vector<8x128xi1>
    %286 = vector.shape_cast %60 : vector<1x128xf32> to vector<1x128xf32>
    %287 = vector.broadcast %286 : vector<1x128xf32> to vector<8x128xf32>
    %288 = vector.shape_cast %59 : vector<1x128xf32> to vector<1x128xf32>
    %289 = vector.broadcast %288 : vector<1x128xf32> to vector<8x128xf32>
    %290 = arith.select %285, %287, %289 : vector<8x128xi1>, vector<8x128xf32>
    %291 = vector.shape_cast %229 : vector<8x1xi1> to vector<8x1xi1>
    %292 = vector.broadcast %291 : vector<8x1xi1> to vector<8x128xi1>
    %293 = vector.shape_cast %62 : vector<1x128xf32> to vector<1x128xf32>
    %294 = vector.broadcast %293 : vector<1x128xf32> to vector<8x128xf32>
    %295 = vector.shape_cast %61 : vector<1x128xf32> to vector<1x128xf32>
    %296 = vector.broadcast %295 : vector<1x128xf32> to vector<8x128xf32>
    %297 = arith.select %292, %294, %296 : vector<8x128xi1>, vector<8x128xf32>
    %298 = vector.shape_cast %233 : vector<8x1xi1> to vector<8x1xi1>
    %299 = vector.broadcast %298 : vector<8x1xi1> to vector<8x128xi1>
    %300 = arith.select %299, %255, %248 : vector<8x128xi1>, vector<8x128xf32>
    %301 = vector.shape_cast %233 : vector<8x1xi1> to vector<8x1xi1>
    %302 = vector.broadcast %301 : vector<8x1xi1> to vector<8x128xi1>
    %303 = arith.select %302, %269, %262 : vector<8x128xi1>, vector<8x128xf32>
    %304 = vector.shape_cast %233 : vector<8x1xi1> to vector<8x1xi1>
    %305 = vector.broadcast %304 : vector<8x1xi1> to vector<8x128xi1>
    %306 = arith.select %305, %283, %276 : vector<8x128xi1>, vector<8x128xf32>
    %307 = vector.shape_cast %233 : vector<8x1xi1> to vector<8x1xi1>
    %308 = vector.broadcast %307 : vector<8x1xi1> to vector<8x128xi1>
    %309 = arith.select %308, %297, %290 : vector<8x128xi1>, vector<8x128xf32>
    %310 = vector.shape_cast %237 : vector<8x1xi1> to vector<8x1xi1>
    %311 = vector.broadcast %310 : vector<8x1xi1> to vector<8x128xi1>
    %312 = arith.select %311, %303, %300 : vector<8x128xi1>, vector<8x128xf32>
    %313 = vector.shape_cast %237 : vector<8x1xi1> to vector<8x1xi1>
    %314 = vector.broadcast %313 : vector<8x1xi1> to vector<8x128xi1>
    %315 = arith.select %314, %309, %306 : vector<8x128xi1>, vector<8x128xf32>
    %316 = vector.shape_cast %241 : vector<8x1xi1> to vector<8x1xi1>
    %317 = vector.broadcast %316 : vector<8x1xi1> to vector<8x128xi1>
    %318 = arith.select %317, %315, %312 : vector<8x128xi1>, vector<8x128xf32>
    %319 = vector.extract_strided_slice %214 {offsets = [0, 0], sizes = [8, 128], strides = [1, 1]} : vector<8x144xf32> to vector<8x128xf32>
    %320 = arith.addf %318, %319 : vector<8x128xf32>
    %321 = arith.negf %320 : vector<8x128xf32>
    %322 = math.exp %321 : vector<8x128xf32>
    %cst_40 = arith.constant 1.000000e+00 : f32
    %323 = vector.broadcast %cst_40 : f32 to vector<8x128xf32>
    %324 = arith.addf %323, %322 : vector<8x128xf32>
    %325 = arith.divf %323, %324 : vector<8x128xf32>
    %326 = math.tanh %320 : vector<8x128xf32>
    %327 = vector.extract_strided_slice %325 {offsets = [0, 0], sizes = [8, 32], strides = [1, 1]} : vector<8x128xf32> to vector<8x32xf32>
    %328 = vector.extract_strided_slice %325 {offsets = [0, 32], sizes = [8, 32], strides = [1, 1]} : vector<8x128xf32> to vector<8x32xf32>
    %329 = vector.extract_strided_slice %326 {offsets = [0, 64], sizes = [8, 32], strides = [1, 1]} : vector<8x128xf32> to vector<8x32xf32>
    %330 = vector.extract_strided_slice %325 {offsets = [0, 96], sizes = [8, 32], strides = [1, 1]} : vector<8x128xf32> to vector<8x32xf32>
    %331 = arith.mulf %328, %208 : vector<8x32xf32>
    %332 = arith.mulf %327, %329 : vector<8x32xf32>
    %333 = arith.addf %331, %332 : vector<8x32xf32>
    %334 = math.tanh %333 : vector<8x32xf32>
    %335 = arith.mulf %330, %334 : vector<8x32xf32>
    %336 = arith.truncf %335 : vector<8x32xf32> to vector<8x32xbf16>
    %cst_41 = arith.constant dense<0.000000e+00> : vector<8x144xf32>
    %337 = tpu.matmul %336, %2, %cst_41 {dimension_numbers = #tpu.dot_dimension_numbers<[1], [0], [0], [1], [0, 0, 1, 1], [], []>} : vector<8x32xbf16>, vector<32x144xbf16>, vector<8x144xf32> -> vector<8x144xf32>
    %338 = vector.broadcast %4 : vector<1x144xf32> to vector<8x144xf32>
    %339 = arith.addf %337, %338 : vector<8x144xf32>
    %340 = vector.extract_strided_slice %339 {offsets = [0, 128], sizes = [8, 16], strides = [1, 1]} : vector<8x144xf32> to vector<8x16xf32>
    %c0_42 = arith.constant 0 : index
    %c32_43 = arith.constant 32 : index
    %341 = vector.load %arg2[%c0_42, %c32_43] : memref<8x128xf32, #tpu.memory_space<vmem>>, vector<8x16xf32>
    tpu.vector_store %arg2[%c0_42, %c32_43], %340 {strides = array<i32>} : memref<8x128xf32, #tpu.memory_space<vmem>>, vector<8x16xf32>,
    %cst_44 = arith.constant dense<0xFF800000> : vector<8xf32>
    %342 = vector.multi_reduction <maximumf>, %340, %cst_44 [1] : vector<8x16xf32> to vector<8xf32>
    %343 = vector.shape_cast %342 : vector<8xf32> to vector<8x1xf32>
    %344 = vector.broadcast %343 : vector<8x1xf32> to vector<8x16xf32>
    %345 = arith.cmpf oeq, %340, %344 : vector<8x16xf32>
    %c16_i32_45 = arith.constant 16 : i32
    %346 = vector.broadcast %c16_i32_45 : i32 to vector<8x16xi32>
    %347 = arith.select %345, %46, %346 : vector<8x16xi1>, vector<8x16xi32>
    %cst_46 = arith.constant dense<2147483647> : vector<8xi32>
    %348 = vector.multi_reduction <minsi>, %347, %cst_46 [1] : vector<8x16xi32> to vector<8xi32>
    %349 = vector.shape_cast %348 : vector<8xi32> to vector<8x1xi32>
    %c0_47 = arith.constant 0 : index
    %c2 = arith.constant 2 : index
    %350 = vector.load %arg3[%c0_47, %c2] : memref<8x8xi32, #tpu.memory_space<vmem>>, vector<8x1xi32>
    tpu.vector_store %arg3[%c0_47, %c2], %349 {strides = array<i32>} : memref<8x8xi32, #tpu.memory_space<vmem>>, vector<8x1xi32>,
    %c1_i32_48 = arith.constant 1 : i32
    %351 = vector.broadcast %c1_i32_48 : i32 to vector<8x1xi32>
    %352 = arith.andi %349, %351 : vector<8x1xi32>
    %c0_i32_49 = arith.constant 0 : i32
    %353 = vector.broadcast %c0_i32_49 : i32 to vector<8x1xi32>
    %354 = arith.cmpi ne, %352, %353 : vector<8x1xi32>
    %c2_i32_50 = arith.constant 2 : i32
    %355 = vector.broadcast %c2_i32_50 : i32 to vector<8x1xi32>
    %356 = arith.andi %349, %355 : vector<8x1xi32>
    %c0_i32_51 = arith.constant 0 : i32
    %357 = vector.broadcast %c0_i32_51 : i32 to vector<8x1xi32>
    %358 = arith.cmpi ne, %356, %357 : vector<8x1xi32>
    %c4_i32_52 = arith.constant 4 : i32
    %359 = vector.broadcast %c4_i32_52 : i32 to vector<8x1xi32>
    %360 = arith.andi %349, %359 : vector<8x1xi32>
    %c0_i32_53 = arith.constant 0 : i32
    %361 = vector.broadcast %c0_i32_53 : i32 to vector<8x1xi32>
    %362 = arith.cmpi ne, %360, %361 : vector<8x1xi32>
    %c8_i32_54 = arith.constant 8 : i32
    %363 = vector.broadcast %c8_i32_54 : i32 to vector<8x1xi32>
    %364 = arith.andi %349, %363 : vector<8x1xi32>
    %c0_i32_55 = arith.constant 0 : i32
    %365 = vector.broadcast %c0_i32_55 : i32 to vector<8x1xi32>
    %366 = arith.cmpi ne, %364, %365 : vector<8x1xi32>
    %367 = vector.shape_cast %354 : vector<8x1xi1> to vector<8x1xi1>
    %368 = vector.broadcast %367 : vector<8x1xi1> to vector<8x128xi1>
    %369 = vector.shape_cast %48 : vector<1x128xf32> to vector<1x128xf32>
    %370 = vector.broadcast %369 : vector<1x128xf32> to vector<8x128xf32>
    %371 = vector.shape_cast %47 : vector<1x128xf32> to vector<1x128xf32>
    %372 = vector.broadcast %371 : vector<1x128xf32> to vector<8x128xf32>
    %373 = arith.select %368, %370, %372 : vector<8x128xi1>, vector<8x128xf32>
    %374 = vector.shape_cast %354 : vector<8x1xi1> to vector<8x1xi1>
    %375 = vector.broadcast %374 : vector<8x1xi1> to vector<8x128xi1>
    %376 = vector.shape_cast %50 : vector<1x128xf32> to vector<1x128xf32>
    %377 = vector.broadcast %376 : vector<1x128xf32> to vector<8x128xf32>
    %378 = vector.shape_cast %49 : vector<1x128xf32> to vector<1x128xf32>
    %379 = vector.broadcast %378 : vector<1x128xf32> to vector<8x128xf32>
    %380 = arith.select %375, %377, %379 : vector<8x128xi1>, vector<8x128xf32>
    %381 = vector.shape_cast %354 : vector<8x1xi1> to vector<8x1xi1>
    %382 = vector.broadcast %381 : vector<8x1xi1> to vector<8x128xi1>
    %383 = vector.shape_cast %52 : vector<1x128xf32> to vector<1x128xf32>
    %384 = vector.broadcast %383 : vector<1x128xf32> to vector<8x128xf32>
    %385 = vector.shape_cast %51 : vector<1x128xf32> to vector<1x128xf32>
    %386 = vector.broadcast %385 : vector<1x128xf32> to vector<8x128xf32>
    %387 = arith.select %382, %384, %386 : vector<8x128xi1>, vector<8x128xf32>
    %388 = vector.shape_cast %354 : vector<8x1xi1> to vector<8x1xi1>
    %389 = vector.broadcast %388 : vector<8x1xi1> to vector<8x128xi1>
    %390 = vector.shape_cast %54 : vector<1x128xf32> to vector<1x128xf32>
    %391 = vector.broadcast %390 : vector<1x128xf32> to vector<8x128xf32>
    %392 = vector.shape_cast %53 : vector<1x128xf32> to vector<1x128xf32>
    %393 = vector.broadcast %392 : vector<1x128xf32> to vector<8x128xf32>
    %394 = arith.select %389, %391, %393 : vector<8x128xi1>, vector<8x128xf32>
    %395 = vector.shape_cast %354 : vector<8x1xi1> to vector<8x1xi1>
    %396 = vector.broadcast %395 : vector<8x1xi1> to vector<8x128xi1>
    %397 = vector.shape_cast %56 : vector<1x128xf32> to vector<1x128xf32>
    %398 = vector.broadcast %397 : vector<1x128xf32> to vector<8x128xf32>
    %399 = vector.shape_cast %55 : vector<1x128xf32> to vector<1x128xf32>
    %400 = vector.broadcast %399 : vector<1x128xf32> to vector<8x128xf32>
    %401 = arith.select %396, %398, %400 : vector<8x128xi1>, vector<8x128xf32>
    %402 = vector.shape_cast %354 : vector<8x1xi1> to vector<8x1xi1>
    %403 = vector.broadcast %402 : vector<8x1xi1> to vector<8x128xi1>
    %404 = vector.shape_cast %58 : vector<1x128xf32> to vector<1x128xf32>
    %405 = vector.broadcast %404 : vector<1x128xf32> to vector<8x128xf32>
    %406 = vector.shape_cast %57 : vector<1x128xf32> to vector<1x128xf32>
    %407 = vector.broadcast %406 : vector<1x128xf32> to vector<8x128xf32>
    %408 = arith.select %403, %405, %407 : vector<8x128xi1>, vector<8x128xf32>
    %409 = vector.shape_cast %354 : vector<8x1xi1> to vector<8x1xi1>
    %410 = vector.broadcast %409 : vector<8x1xi1> to vector<8x128xi1>
    %411 = vector.shape_cast %60 : vector<1x128xf32> to vector<1x128xf32>
    %412 = vector.broadcast %411 : vector<1x128xf32> to vector<8x128xf32>
    %413 = vector.shape_cast %59 : vector<1x128xf32> to vector<1x128xf32>
    %414 = vector.broadcast %413 : vector<1x128xf32> to vector<8x128xf32>
    %415 = arith.select %410, %412, %414 : vector<8x128xi1>, vector<8x128xf32>
    %416 = vector.shape_cast %354 : vector<8x1xi1> to vector<8x1xi1>
    %417 = vector.broadcast %416 : vector<8x1xi1> to vector<8x128xi1>
    %418 = vector.shape_cast %62 : vector<1x128xf32> to vector<1x128xf32>
    %419 = vector.broadcast %418 : vector<1x128xf32> to vector<8x128xf32>
    %420 = vector.shape_cast %61 : vector<1x128xf32> to vector<1x128xf32>
    %421 = vector.broadcast %420 : vector<1x128xf32> to vector<8x128xf32>
    %422 = arith.select %417, %419, %421 : vector<8x128xi1>, vector<8x128xf32>
    %423 = vector.shape_cast %358 : vector<8x1xi1> to vector<8x1xi1>
    %424 = vector.broadcast %423 : vector<8x1xi1> to vector<8x128xi1>
    %425 = arith.select %424, %380, %373 : vector<8x128xi1>, vector<8x128xf32>
    %426 = vector.shape_cast %358 : vector<8x1xi1> to vector<8x1xi1>
    %427 = vector.broadcast %426 : vector<8x1xi1> to vector<8x128xi1>
    %428 = arith.select %427, %394, %387 : vector<8x128xi1>, vector<8x128xf32>
    %429 = vector.shape_cast %358 : vector<8x1xi1> to vector<8x1xi1>
    %430 = vector.broadcast %429 : vector<8x1xi1> to vector<8x128xi1>
    %431 = arith.select %430, %408, %401 : vector<8x128xi1>, vector<8x128xf32>
    %432 = vector.shape_cast %358 : vector<8x1xi1> to vector<8x1xi1>
    %433 = vector.broadcast %432 : vector<8x1xi1> to vector<8x128xi1>
    %434 = arith.select %433, %422, %415 : vector<8x128xi1>, vector<8x128xf32>
    %435 = vector.shape_cast %362 : vector<8x1xi1> to vector<8x1xi1>
    %436 = vector.broadcast %435 : vector<8x1xi1> to vector<8x128xi1>
    %437 = arith.select %436, %428, %425 : vector<8x128xi1>, vector<8x128xf32>
    %438 = vector.shape_cast %362 : vector<8x1xi1> to vector<8x1xi1>
    %439 = vector.broadcast %438 : vector<8x1xi1> to vector<8x128xi1>
    %440 = arith.select %439, %434, %431 : vector<8x128xi1>, vector<8x128xf32>
    %441 = vector.shape_cast %366 : vector<8x1xi1> to vector<8x1xi1>
    %442 = vector.broadcast %441 : vector<8x1xi1> to vector<8x128xi1>
    %443 = arith.select %442, %440, %437 : vector<8x128xi1>, vector<8x128xf32>
    %444 = vector.extract_strided_slice %339 {offsets = [0, 0], sizes = [8, 128], strides = [1, 1]} : vector<8x144xf32> to vector<8x128xf32>
    %445 = arith.addf %443, %444 : vector<8x128xf32>
    %446 = arith.negf %445 : vector<8x128xf32>
    %447 = math.exp %446 : vector<8x128xf32>
    %cst_56 = arith.constant 1.000000e+00 : f32
    %448 = vector.broadcast %cst_56 : f32 to vector<8x128xf32>
    %449 = arith.addf %448, %447 : vector<8x128xf32>
    %450 = arith.divf %448, %449 : vector<8x128xf32>
    %451 = math.tanh %445 : vector<8x128xf32>
    %452 = vector.extract_strided_slice %450 {offsets = [0, 0], sizes = [8, 32], strides = [1, 1]} : vector<8x128xf32> to vector<8x32xf32>
    %453 = vector.extract_strided_slice %450 {offsets = [0, 32], sizes = [8, 32], strides = [1, 1]} : vector<8x128xf32> to vector<8x32xf32>
    %454 = vector.extract_strided_slice %451 {offsets = [0, 64], sizes = [8, 32], strides = [1, 1]} : vector<8x128xf32> to vector<8x32xf32>
    %455 = vector.extract_strided_slice %450 {offsets = [0, 96], sizes = [8, 32], strides = [1, 1]} : vector<8x128xf32> to vector<8x32xf32>
    %456 = arith.mulf %453, %333 : vector<8x32xf32>
    %457 = arith.mulf %452, %454 : vector<8x32xf32>
    %458 = arith.addf %456, %457 : vector<8x32xf32>
    %459 = math.tanh %458 : vector<8x32xf32>
    %460 = arith.mulf %455, %459 : vector<8x32xf32>
    %461 = arith.truncf %460 : vector<8x32xf32> to vector<8x32xbf16>
    %cst_57 = arith.constant dense<0.000000e+00> : vector<8x144xf32>
    %462 = tpu.matmul %461, %2, %cst_57 {dimension_numbers = #tpu.dot_dimension_numbers<[1], [0], [0], [1], [0, 0, 1, 1], [], []>} : vector<8x32xbf16>, vector<32x144xbf16>, vector<8x144xf32> -> vector<8x144xf32>
    %463 = vector.broadcast %4 : vector<1x144xf32> to vector<8x144xf32>
    %464 = arith.addf %462, %463 : vector<8x144xf32>
    %465 = vector.extract_strided_slice %464 {offsets = [0, 128], sizes = [8, 16], strides = [1, 1]} : vector<8x144xf32> to vector<8x16xf32>
    %c0_58 = arith.constant 0 : index
    %c48 = arith.constant 48 : index
    %466 = vector.load %arg2[%c0_58, %c48] : memref<8x128xf32, #tpu.memory_space<vmem>>, vector<8x16xf32>
    tpu.vector_store %arg2[%c0_58, %c48], %465 {strides = array<i32>} : memref<8x128xf32, #tpu.memory_space<vmem>>, vector<8x16xf32>,
    %cst_59 = arith.constant dense<0xFF800000> : vector<8xf32>
    %467 = vector.multi_reduction <maximumf>, %465, %cst_59 [1] : vector<8x16xf32> to vector<8xf32>
    %468 = vector.shape_cast %467 : vector<8xf32> to vector<8x1xf32>
    %469 = vector.broadcast %468 : vector<8x1xf32> to vector<8x16xf32>
    %470 = arith.cmpf oeq, %465, %469 : vector<8x16xf32>
    %c16_i32_60 = arith.constant 16 : i32
    %471 = vector.broadcast %c16_i32_60 : i32 to vector<8x16xi32>
    %472 = arith.select %470, %46, %471 : vector<8x16xi1>, vector<8x16xi32>
    %cst_61 = arith.constant dense<2147483647> : vector<8xi32>
    %473 = vector.multi_reduction <minsi>, %472, %cst_61 [1] : vector<8x16xi32> to vector<8xi32>
    %474 = vector.shape_cast %473 : vector<8xi32> to vector<8x1xi32>
    %c0_62 = arith.constant 0 : index
    %c3 = arith.constant 3 : index
    %475 = vector.load %arg3[%c0_62, %c3] : memref<8x8xi32, #tpu.memory_space<vmem>>, vector<8x1xi32>
    tpu.vector_store %arg3[%c0_62, %c3], %474 {strides = array<i32>} : memref<8x8xi32, #tpu.memory_space<vmem>>, vector<8x1xi32>,
    %c1_i32_63 = arith.constant 1 : i32
    %476 = vector.broadcast %c1_i32_63 : i32 to vector<8x1xi32>
    %477 = arith.andi %474, %476 : vector<8x1xi32>
    %c0_i32_64 = arith.constant 0 : i32
    %478 = vector.broadcast %c0_i32_64 : i32 to vector<8x1xi32>
    %479 = arith.cmpi ne, %477, %478 : vector<8x1xi32>
    %c2_i32_65 = arith.constant 2 : i32
    %480 = vector.broadcast %c2_i32_65 : i32 to vector<8x1xi32>
    %481 = arith.andi %474, %480 : vector<8x1xi32>
    %c0_i32_66 = arith.constant 0 : i32
    %482 = vector.broadcast %c0_i32_66 : i32 to vector<8x1xi32>
    %483 = arith.cmpi ne, %481, %482 : vector<8x1xi32>
    %c4_i32_67 = arith.constant 4 : i32
    %484 = vector.broadcast %c4_i32_67 : i32 to vector<8x1xi32>
    %485 = arith.andi %474, %484 : vector<8x1xi32>
    %c0_i32_68 = arith.constant 0 : i32
    %486 = vector.broadcast %c0_i32_68 : i32 to vector<8x1xi32>
    %487 = arith.cmpi ne, %485, %486 : vector<8x1xi32>
    %c8_i32_69 = arith.constant 8 : i32
    %488 = vector.broadcast %c8_i32_69 : i32 to vector<8x1xi32>
    %489 = arith.andi %474, %488 : vector<8x1xi32>
    %c0_i32_70 = arith.constant 0 : i32
    %490 = vector.broadcast %c0_i32_70 : i32 to vector<8x1xi32>
    %491 = arith.cmpi ne, %489, %490 : vector<8x1xi32>
    %492 = vector.shape_cast %479 : vector<8x1xi1> to vector<8x1xi1>
    %493 = vector.broadcast %492 : vector<8x1xi1> to vector<8x128xi1>
    %494 = vector.shape_cast %48 : vector<1x128xf32> to vector<1x128xf32>
    %495 = vector.broadcast %494 : vector<1x128xf32> to vector<8x128xf32>
    %496 = vector.shape_cast %47 : vector<1x128xf32> to vector<1x128xf32>
    %497 = vector.broadcast %496 : vector<1x128xf32> to vector<8x128xf32>
    %498 = arith.select %493, %495, %497 : vector<8x128xi1>, vector<8x128xf32>
    %499 = vector.shape_cast %479 : vector<8x1xi1> to vector<8x1xi1>
    %500 = vector.broadcast %499 : vector<8x1xi1> to vector<8x128xi1>
    %501 = vector.shape_cast %50 : vector<1x128xf32> to vector<1x128xf32>
    %502 = vector.broadcast %501 : vector<1x128xf32> to vector<8x128xf32>
    %503 = vector.shape_cast %49 : vector<1x128xf32> to vector<1x128xf32>
    %504 = vector.broadcast %503 : vector<1x128xf32> to vector<8x128xf32>
    %505 = arith.select %500, %502, %504 : vector<8x128xi1>, vector<8x128xf32>
    %506 = vector.shape_cast %479 : vector<8x1xi1> to vector<8x1xi1>
    %507 = vector.broadcast %506 : vector<8x1xi1> to vector<8x128xi1>
    %508 = vector.shape_cast %52 : vector<1x128xf32> to vector<1x128xf32>
    %509 = vector.broadcast %508 : vector<1x128xf32> to vector<8x128xf32>
    %510 = vector.shape_cast %51 : vector<1x128xf32> to vector<1x128xf32>
    %511 = vector.broadcast %510 : vector<1x128xf32> to vector<8x128xf32>
    %512 = arith.select %507, %509, %511 : vector<8x128xi1>, vector<8x128xf32>
    %513 = vector.shape_cast %479 : vector<8x1xi1> to vector<8x1xi1>
    %514 = vector.broadcast %513 : vector<8x1xi1> to vector<8x128xi1>
    %515 = vector.shape_cast %54 : vector<1x128xf32> to vector<1x128xf32>
    %516 = vector.broadcast %515 : vector<1x128xf32> to vector<8x128xf32>
    %517 = vector.shape_cast %53 : vector<1x128xf32> to vector<1x128xf32>
    %518 = vector.broadcast %517 : vector<1x128xf32> to vector<8x128xf32>
    %519 = arith.select %514, %516, %518 : vector<8x128xi1>, vector<8x128xf32>
    %520 = vector.shape_cast %479 : vector<8x1xi1> to vector<8x1xi1>
    %521 = vector.broadcast %520 : vector<8x1xi1> to vector<8x128xi1>
    %522 = vector.shape_cast %56 : vector<1x128xf32> to vector<1x128xf32>
    %523 = vector.broadcast %522 : vector<1x128xf32> to vector<8x128xf32>
    %524 = vector.shape_cast %55 : vector<1x128xf32> to vector<1x128xf32>
    %525 = vector.broadcast %524 : vector<1x128xf32> to vector<8x128xf32>
    %526 = arith.select %521, %523, %525 : vector<8x128xi1>, vector<8x128xf32>
    %527 = vector.shape_cast %479 : vector<8x1xi1> to vector<8x1xi1>
    %528 = vector.broadcast %527 : vector<8x1xi1> to vector<8x128xi1>
    %529 = vector.shape_cast %58 : vector<1x128xf32> to vector<1x128xf32>
    %530 = vector.broadcast %529 : vector<1x128xf32> to vector<8x128xf32>
    %531 = vector.shape_cast %57 : vector<1x128xf32> to vector<1x128xf32>
    %532 = vector.broadcast %531 : vector<1x128xf32> to vector<8x128xf32>
    %533 = arith.select %528, %530, %532 : vector<8x128xi1>, vector<8x128xf32>
    %534 = vector.shape_cast %479 : vector<8x1xi1> to vector<8x1xi1>
    %535 = vector.broadcast %534 : vector<8x1xi1> to vector<8x128xi1>
    %536 = vector.shape_cast %60 : vector<1x128xf32> to vector<1x128xf32>
    %537 = vector.broadcast %536 : vector<1x128xf32> to vector<8x128xf32>
    %538 = vector.shape_cast %59 : vector<1x128xf32> to vector<1x128xf32>
    %539 = vector.broadcast %538 : vector<1x128xf32> to vector<8x128xf32>
    %540 = arith.select %535, %537, %539 : vector<8x128xi1>, vector<8x128xf32>
    %541 = vector.shape_cast %479 : vector<8x1xi1> to vector<8x1xi1>
    %542 = vector.broadcast %541 : vector<8x1xi1> to vector<8x128xi1>
    %543 = vector.shape_cast %62 : vector<1x128xf32> to vector<1x128xf32>
    %544 = vector.broadcast %543 : vector<1x128xf32> to vector<8x128xf32>
    %545 = vector.shape_cast %61 : vector<1x128xf32> to vector<1x128xf32>
    %546 = vector.broadcast %545 : vector<1x128xf32> to vector<8x128xf32>
    %547 = arith.select %542, %544, %546 : vector<8x128xi1>, vector<8x128xf32>
    %548 = vector.shape_cast %483 : vector<8x1xi1> to vector<8x1xi1>
    %549 = vector.broadcast %548 : vector<8x1xi1> to vector<8x128xi1>
    %550 = arith.select %549, %505, %498 : vector<8x128xi1>, vector<8x128xf32>
    %551 = vector.shape_cast %483 : vector<8x1xi1> to vector<8x1xi1>
    %552 = vector.broadcast %551 : vector<8x1xi1> to vector<8x128xi1>
    %553 = arith.select %552, %519, %512 : vector<8x128xi1>, vector<8x128xf32>
    %554 = vector.shape_cast %483 : vector<8x1xi1> to vector<8x1xi1>
    %555 = vector.broadcast %554 : vector<8x1xi1> to vector<8x128xi1>
    %556 = arith.select %555, %533, %526 : vector<8x128xi1>, vector<8x128xf32>
    %557 = vector.shape_cast %483 : vector<8x1xi1> to vector<8x1xi1>
    %558 = vector.broadcast %557 : vector<8x1xi1> to vector<8x128xi1>
    %559 = arith.select %558, %547, %540 : vector<8x128xi1>, vector<8x128xf32>
    %560 = vector.shape_cast %487 : vector<8x1xi1> to vector<8x1xi1>
    %561 = vector.broadcast %560 : vector<8x1xi1> to vector<8x128xi1>
    %562 = arith.select %561, %553, %550 : vector<8x128xi1>, vector<8x128xf32>
    %563 = vector.shape_cast %487 : vector<8x1xi1> to vector<8x1xi1>
    %564 = vector.broadcast %563 : vector<8x1xi1> to vector<8x128xi1>
    %565 = arith.select %564, %559, %556 : vector<8x128xi1>, vector<8x128xf32>
    %566 = vector.shape_cast %491 : vector<8x1xi1> to vector<8x1xi1>
    %567 = vector.broadcast %566 : vector<8x1xi1> to vector<8x128xi1>
    %568 = arith.select %567, %565, %562 : vector<8x128xi1>, vector<8x128xf32>
    %569 = vector.extract_strided_slice %464 {offsets = [0, 0], sizes = [8, 128], strides = [1, 1]} : vector<8x144xf32> to vector<8x128xf32>
    %570 = arith.addf %568, %569 : vector<8x128xf32>
    %571 = arith.negf %570 : vector<8x128xf32>
    %572 = math.exp %571 : vector<8x128xf32>
    %cst_71 = arith.constant 1.000000e+00 : f32
    %573 = vector.broadcast %cst_71 : f32 to vector<8x128xf32>
    %574 = arith.addf %573, %572 : vector<8x128xf32>
    %575 = arith.divf %573, %574 : vector<8x128xf32>
    %576 = math.tanh %570 : vector<8x128xf32>
    %577 = vector.extract_strided_slice %575 {offsets = [0, 0], sizes = [8, 32], strides = [1, 1]} : vector<8x128xf32> to vector<8x32xf32>
    %578 = vector.extract_strided_slice %575 {offsets = [0, 32], sizes = [8, 32], strides = [1, 1]} : vector<8x128xf32> to vector<8x32xf32>
    %579 = vector.extract_strided_slice %576 {offsets = [0, 64], sizes = [8, 32], strides = [1, 1]} : vector<8x128xf32> to vector<8x32xf32>
    %580 = vector.extract_strided_slice %575 {offsets = [0, 96], sizes = [8, 32], strides = [1, 1]} : vector<8x128xf32> to vector<8x32xf32>
    %581 = arith.mulf %578, %458 : vector<8x32xf32>
    %582 = arith.mulf %577, %579 : vector<8x32xf32>
    %583 = arith.addf %581, %582 : vector<8x32xf32>
    %584 = math.tanh %583 : vector<8x32xf32>
    %585 = arith.mulf %580, %584 : vector<8x32xf32>
    %586 = arith.truncf %585 : vector<8x32xf32> to vector<8x32xbf16>
    %cst_72 = arith.constant dense<0.000000e+00> : vector<8x144xf32>
    %587 = tpu.matmul %586, %2, %cst_72 {dimension_numbers = #tpu.dot_dimension_numbers<[1], [0], [0], [1], [0, 0, 1, 1], [], []>} : vector<8x32xbf16>, vector<32x144xbf16>, vector<8x144xf32> -> vector<8x144xf32>
    %588 = vector.broadcast %4 : vector<1x144xf32> to vector<8x144xf32>
    %589 = arith.addf %587, %588 : vector<8x144xf32>
    %590 = vector.extract_strided_slice %589 {offsets = [0, 128], sizes = [8, 16], strides = [1, 1]} : vector<8x144xf32> to vector<8x16xf32>
    %c0_73 = arith.constant 0 : index
    %c64_74 = arith.constant 64 : index
    %591 = vector.load %arg2[%c0_73, %c64_74] : memref<8x128xf32, #tpu.memory_space<vmem>>, vector<8x16xf32>
    tpu.vector_store %arg2[%c0_73, %c64_74], %590 {strides = array<i32>} : memref<8x128xf32, #tpu.memory_space<vmem>>, vector<8x16xf32>,
    %cst_75 = arith.constant dense<0xFF800000> : vector<8xf32>
    %592 = vector.multi_reduction <maximumf>, %590, %cst_75 [1] : vector<8x16xf32> to vector<8xf32>
    %593 = vector.shape_cast %592 : vector<8xf32> to vector<8x1xf32>
    %594 = vector.broadcast %593 : vector<8x1xf32> to vector<8x16xf32>
    %595 = arith.cmpf oeq, %590, %594 : vector<8x16xf32>
    %c16_i32_76 = arith.constant 16 : i32
    %596 = vector.broadcast %c16_i32_76 : i32 to vector<8x16xi32>
    %597 = arith.select %595, %46, %596 : vector<8x16xi1>, vector<8x16xi32>
    %cst_77 = arith.constant dense<2147483647> : vector<8xi32>
    %598 = vector.multi_reduction <minsi>, %597, %cst_77 [1] : vector<8x16xi32> to vector<8xi32>
    %599 = vector.shape_cast %598 : vector<8xi32> to vector<8x1xi32>
    %c0_78 = arith.constant 0 : index
    %c4 = arith.constant 4 : index
    %600 = vector.load %arg3[%c0_78, %c4] : memref<8x8xi32, #tpu.memory_space<vmem>>, vector<8x1xi32>
    tpu.vector_store %arg3[%c0_78, %c4], %599 {strides = array<i32>} : memref<8x8xi32, #tpu.memory_space<vmem>>, vector<8x1xi32>,
    %c1_i32_79 = arith.constant 1 : i32
    %601 = vector.broadcast %c1_i32_79 : i32 to vector<8x1xi32>
    %602 = arith.andi %599, %601 : vector<8x1xi32>
    %c0_i32_80 = arith.constant 0 : i32
    %603 = vector.broadcast %c0_i32_80 : i32 to vector<8x1xi32>
    %604 = arith.cmpi ne, %602, %603 : vector<8x1xi32>
    %c2_i32_81 = arith.constant 2 : i32
    %605 = vector.broadcast %c2_i32_81 : i32 to vector<8x1xi32>
    %606 = arith.andi %599, %605 : vector<8x1xi32>
    %c0_i32_82 = arith.constant 0 : i32
    %607 = vector.broadcast %c0_i32_82 : i32 to vector<8x1xi32>
    %608 = arith.cmpi ne, %606, %607 : vector<8x1xi32>
    %c4_i32_83 = arith.constant 4 : i32
    %609 = vector.broadcast %c4_i32_83 : i32 to vector<8x1xi32>
    %610 = arith.andi %599, %609 : vector<8x1xi32>
    %c0_i32_84 = arith.constant 0 : i32
    %611 = vector.broadcast %c0_i32_84 : i32 to vector<8x1xi32>
    %612 = arith.cmpi ne, %610, %611 : vector<8x1xi32>
    %c8_i32_85 = arith.constant 8 : i32
    %613 = vector.broadcast %c8_i32_85 : i32 to vector<8x1xi32>
    %614 = arith.andi %599, %613 : vector<8x1xi32>
    %c0_i32_86 = arith.constant 0 : i32
    %615 = vector.broadcast %c0_i32_86 : i32 to vector<8x1xi32>
    %616 = arith.cmpi ne, %614, %615 : vector<8x1xi32>
    %617 = vector.shape_cast %604 : vector<8x1xi1> to vector<8x1xi1>
    %618 = vector.broadcast %617 : vector<8x1xi1> to vector<8x128xi1>
    %619 = vector.shape_cast %48 : vector<1x128xf32> to vector<1x128xf32>
    %620 = vector.broadcast %619 : vector<1x128xf32> to vector<8x128xf32>
    %621 = vector.shape_cast %47 : vector<1x128xf32> to vector<1x128xf32>
    %622 = vector.broadcast %621 : vector<1x128xf32> to vector<8x128xf32>
    %623 = arith.select %618, %620, %622 : vector<8x128xi1>, vector<8x128xf32>
    %624 = vector.shape_cast %604 : vector<8x1xi1> to vector<8x1xi1>
    %625 = vector.broadcast %624 : vector<8x1xi1> to vector<8x128xi1>
    %626 = vector.shape_cast %50 : vector<1x128xf32> to vector<1x128xf32>
    %627 = vector.broadcast %626 : vector<1x128xf32> to vector<8x128xf32>
    %628 = vector.shape_cast %49 : vector<1x128xf32> to vector<1x128xf32>
    %629 = vector.broadcast %628 : vector<1x128xf32> to vector<8x128xf32>
    %630 = arith.select %625, %627, %629 : vector<8x128xi1>, vector<8x128xf32>
    %631 = vector.shape_cast %604 : vector<8x1xi1> to vector<8x1xi1>
    %632 = vector.broadcast %631 : vector<8x1xi1> to vector<8x128xi1>
    %633 = vector.shape_cast %52 : vector<1x128xf32> to vector<1x128xf32>
    %634 = vector.broadcast %633 : vector<1x128xf32> to vector<8x128xf32>
    %635 = vector.shape_cast %51 : vector<1x128xf32> to vector<1x128xf32>
    %636 = vector.broadcast %635 : vector<1x128xf32> to vector<8x128xf32>
    %637 = arith.select %632, %634, %636 : vector<8x128xi1>, vector<8x128xf32>
    %638 = vector.shape_cast %604 : vector<8x1xi1> to vector<8x1xi1>
    %639 = vector.broadcast %638 : vector<8x1xi1> to vector<8x128xi1>
    %640 = vector.shape_cast %54 : vector<1x128xf32> to vector<1x128xf32>
    %641 = vector.broadcast %640 : vector<1x128xf32> to vector<8x128xf32>
    %642 = vector.shape_cast %53 : vector<1x128xf32> to vector<1x128xf32>
    %643 = vector.broadcast %642 : vector<1x128xf32> to vector<8x128xf32>
    %644 = arith.select %639, %641, %643 : vector<8x128xi1>, vector<8x128xf32>
    %645 = vector.shape_cast %604 : vector<8x1xi1> to vector<8x1xi1>
    %646 = vector.broadcast %645 : vector<8x1xi1> to vector<8x128xi1>
    %647 = vector.shape_cast %56 : vector<1x128xf32> to vector<1x128xf32>
    %648 = vector.broadcast %647 : vector<1x128xf32> to vector<8x128xf32>
    %649 = vector.shape_cast %55 : vector<1x128xf32> to vector<1x128xf32>
    %650 = vector.broadcast %649 : vector<1x128xf32> to vector<8x128xf32>
    %651 = arith.select %646, %648, %650 : vector<8x128xi1>, vector<8x128xf32>
    %652 = vector.shape_cast %604 : vector<8x1xi1> to vector<8x1xi1>
    %653 = vector.broadcast %652 : vector<8x1xi1> to vector<8x128xi1>
    %654 = vector.shape_cast %58 : vector<1x128xf32> to vector<1x128xf32>
    %655 = vector.broadcast %654 : vector<1x128xf32> to vector<8x128xf32>
    %656 = vector.shape_cast %57 : vector<1x128xf32> to vector<1x128xf32>
    %657 = vector.broadcast %656 : vector<1x128xf32> to vector<8x128xf32>
    %658 = arith.select %653, %655, %657 : vector<8x128xi1>, vector<8x128xf32>
    %659 = vector.shape_cast %604 : vector<8x1xi1> to vector<8x1xi1>
    %660 = vector.broadcast %659 : vector<8x1xi1> to vector<8x128xi1>
    %661 = vector.shape_cast %60 : vector<1x128xf32> to vector<1x128xf32>
    %662 = vector.broadcast %661 : vector<1x128xf32> to vector<8x128xf32>
    %663 = vector.shape_cast %59 : vector<1x128xf32> to vector<1x128xf32>
    %664 = vector.broadcast %663 : vector<1x128xf32> to vector<8x128xf32>
    %665 = arith.select %660, %662, %664 : vector<8x128xi1>, vector<8x128xf32>
    %666 = vector.shape_cast %604 : vector<8x1xi1> to vector<8x1xi1>
    %667 = vector.broadcast %666 : vector<8x1xi1> to vector<8x128xi1>
    %668 = vector.shape_cast %62 : vector<1x128xf32> to vector<1x128xf32>
    %669 = vector.broadcast %668 : vector<1x128xf32> to vector<8x128xf32>
    %670 = vector.shape_cast %61 : vector<1x128xf32> to vector<1x128xf32>
    %671 = vector.broadcast %670 : vector<1x128xf32> to vector<8x128xf32>
    %672 = arith.select %667, %669, %671 : vector<8x128xi1>, vector<8x128xf32>
    %673 = vector.shape_cast %608 : vector<8x1xi1> to vector<8x1xi1>
    %674 = vector.broadcast %673 : vector<8x1xi1> to vector<8x128xi1>
    %675 = arith.select %674, %630, %623 : vector<8x128xi1>, vector<8x128xf32>
    %676 = vector.shape_cast %608 : vector<8x1xi1> to vector<8x1xi1>
    %677 = vector.broadcast %676 : vector<8x1xi1> to vector<8x128xi1>
    %678 = arith.select %677, %644, %637 : vector<8x128xi1>, vector<8x128xf32>
    %679 = vector.shape_cast %608 : vector<8x1xi1> to vector<8x1xi1>
    %680 = vector.broadcast %679 : vector<8x1xi1> to vector<8x128xi1>
    %681 = arith.select %680, %658, %651 : vector<8x128xi1>, vector<8x128xf32>
    %682 = vector.shape_cast %608 : vector<8x1xi1> to vector<8x1xi1>
    %683 = vector.broadcast %682 : vector<8x1xi1> to vector<8x128xi1>
    %684 = arith.select %683, %672, %665 : vector<8x128xi1>, vector<8x128xf32>
    %685 = vector.shape_cast %612 : vector<8x1xi1> to vector<8x1xi1>
    %686 = vector.broadcast %685 : vector<8x1xi1> to vector<8x128xi1>
    %687 = arith.select %686, %678, %675 : vector<8x128xi1>, vector<8x128xf32>
    %688 = vector.shape_cast %612 : vector<8x1xi1> to vector<8x1xi1>
    %689 = vector.broadcast %688 : vector<8x1xi1> to vector<8x128xi1>
    %690 = arith.select %689, %684, %681 : vector<8x128xi1>, vector<8x128xf32>
    %691 = vector.shape_cast %616 : vector<8x1xi1> to vector<8x1xi1>
    %692 = vector.broadcast %691 : vector<8x1xi1> to vector<8x128xi1>
    %693 = arith.select %692, %690, %687 : vector<8x128xi1>, vector<8x128xf32>
    %694 = vector.extract_strided_slice %589 {offsets = [0, 0], sizes = [8, 128], strides = [1, 1]} : vector<8x144xf32> to vector<8x128xf32>
    %695 = arith.addf %693, %694 : vector<8x128xf32>
    %696 = arith.negf %695 : vector<8x128xf32>
    %697 = math.exp %696 : vector<8x128xf32>
    %cst_87 = arith.constant 1.000000e+00 : f32
    %698 = vector.broadcast %cst_87 : f32 to vector<8x128xf32>
    %699 = arith.addf %698, %697 : vector<8x128xf32>
    %700 = arith.divf %698, %699 : vector<8x128xf32>
    %701 = math.tanh %695 : vector<8x128xf32>
    %702 = vector.extract_strided_slice %700 {offsets = [0, 0], sizes = [8, 32], strides = [1, 1]} : vector<8x128xf32> to vector<8x32xf32>
    %703 = vector.extract_strided_slice %700 {offsets = [0, 32], sizes = [8, 32], strides = [1, 1]} : vector<8x128xf32> to vector<8x32xf32>
    %704 = vector.extract_strided_slice %701 {offsets = [0, 64], sizes = [8, 32], strides = [1, 1]} : vector<8x128xf32> to vector<8x32xf32>
    %705 = vector.extract_strided_slice %700 {offsets = [0, 96], sizes = [8, 32], strides = [1, 1]} : vector<8x128xf32> to vector<8x32xf32>
    %706 = arith.mulf %703, %583 : vector<8x32xf32>
    %707 = arith.mulf %702, %704 : vector<8x32xf32>
    %708 = arith.addf %706, %707 : vector<8x32xf32>
    %709 = math.tanh %708 : vector<8x32xf32>
    %710 = arith.mulf %705, %709 : vector<8x32xf32>
    %711 = arith.truncf %710 : vector<8x32xf32> to vector<8x32xbf16>
    %cst_88 = arith.constant dense<0.000000e+00> : vector<8x144xf32>
    %712 = tpu.matmul %711, %2, %cst_88 {dimension_numbers = #tpu.dot_dimension_numbers<[1], [0], [0], [1], [0, 0, 1, 1], [], []>} : vector<8x32xbf16>, vector<32x144xbf16>, vector<8x144xf32> -> vector<8x144xf32>
    %713 = vector.broadcast %4 : vector<1x144xf32> to vector<8x144xf32>
    %714 = arith.addf %712, %713 : vector<8x144xf32>
    %715 = vector.extract_strided_slice %714 {offsets = [0, 128], sizes = [8, 16], strides = [1, 1]} : vector<8x144xf32> to vector<8x16xf32>
    %c0_89 = arith.constant 0 : index
    %c80_90 = arith.constant 80 : index
    %716 = vector.load %arg2[%c0_89, %c80_90] : memref<8x128xf32, #tpu.memory_space<vmem>>, vector<8x16xf32>
    tpu.vector_store %arg2[%c0_89, %c80_90], %715 {strides = array<i32>} : memref<8x128xf32, #tpu.memory_space<vmem>>, vector<8x16xf32>,
    %cst_91 = arith.constant dense<0xFF800000> : vector<8xf32>
    %717 = vector.multi_reduction <maximumf>, %715, %cst_91 [1] : vector<8x16xf32> to vector<8xf32>
    %718 = vector.shape_cast %717 : vector<8xf32> to vector<8x1xf32>
    %719 = vector.broadcast %718 : vector<8x1xf32> to vector<8x16xf32>
    %720 = arith.cmpf oeq, %715, %719 : vector<8x16xf32>
    %c16_i32_92 = arith.constant 16 : i32
    %721 = vector.broadcast %c16_i32_92 : i32 to vector<8x16xi32>
    %722 = arith.select %720, %46, %721 : vector<8x16xi1>, vector<8x16xi32>
    %cst_93 = arith.constant dense<2147483647> : vector<8xi32>
    %723 = vector.multi_reduction <minsi>, %722, %cst_93 [1] : vector<8x16xi32> to vector<8xi32>
    %724 = vector.shape_cast %723 : vector<8xi32> to vector<8x1xi32>
    %c0_94 = arith.constant 0 : index
    %c5 = arith.constant 5 : index
    %725 = vector.load %arg3[%c0_94, %c5] : memref<8x8xi32, #tpu.memory_space<vmem>>, vector<8x1xi32>
    tpu.vector_store %arg3[%c0_94, %c5], %724 {strides = array<i32>} : memref<8x8xi32, #tpu.memory_space<vmem>>, vector<8x1xi32>,
    %c1_i32_95 = arith.constant 1 : i32
    %726 = vector.broadcast %c1_i32_95 : i32 to vector<8x1xi32>
    %727 = arith.andi %724, %726 : vector<8x1xi32>
    %c0_i32_96 = arith.constant 0 : i32
    %728 = vector.broadcast %c0_i32_96 : i32 to vector<8x1xi32>
    %729 = arith.cmpi ne, %727, %728 : vector<8x1xi32>
    %c2_i32_97 = arith.constant 2 : i32
    %730 = vector.broadcast %c2_i32_97 : i32 to vector<8x1xi32>
    %731 = arith.andi %724, %730 : vector<8x1xi32>
    %c0_i32_98 = arith.constant 0 : i32
    %732 = vector.broadcast %c0_i32_98 : i32 to vector<8x1xi32>
    %733 = arith.cmpi ne, %731, %732 : vector<8x1xi32>
    %c4_i32_99 = arith.constant 4 : i32
    %734 = vector.broadcast %c4_i32_99 : i32 to vector<8x1xi32>
    %735 = arith.andi %724, %734 : vector<8x1xi32>
    %c0_i32_100 = arith.constant 0 : i32
    %736 = vector.broadcast %c0_i32_100 : i32 to vector<8x1xi32>
    %737 = arith.cmpi ne, %735, %736 : vector<8x1xi32>
    %c8_i32_101 = arith.constant 8 : i32
    %738 = vector.broadcast %c8_i32_101 : i32 to vector<8x1xi32>
    %739 = arith.andi %724, %738 : vector<8x1xi32>
    %c0_i32_102 = arith.constant 0 : i32
    %740 = vector.broadcast %c0_i32_102 : i32 to vector<8x1xi32>
    %741 = arith.cmpi ne, %739, %740 : vector<8x1xi32>
    %742 = vector.shape_cast %729 : vector<8x1xi1> to vector<8x1xi1>
    %743 = vector.broadcast %742 : vector<8x1xi1> to vector<8x128xi1>
    %744 = vector.shape_cast %48 : vector<1x128xf32> to vector<1x128xf32>
    %745 = vector.broadcast %744 : vector<1x128xf32> to vector<8x128xf32>
    %746 = vector.shape_cast %47 : vector<1x128xf32> to vector<1x128xf32>
    %747 = vector.broadcast %746 : vector<1x128xf32> to vector<8x128xf32>
    %748 = arith.select %743, %745, %747 : vector<8x128xi1>, vector<8x128xf32>
    %749 = vector.shape_cast %729 : vector<8x1xi1> to vector<8x1xi1>
    %750 = vector.broadcast %749 : vector<8x1xi1> to vector<8x128xi1>
    %751 = vector.shape_cast %50 : vector<1x128xf32> to vector<1x128xf32>
    %752 = vector.broadcast %751 : vector<1x128xf32> to vector<8x128xf32>
    %753 = vector.shape_cast %49 : vector<1x128xf32> to vector<1x128xf32>
    %754 = vector.broadcast %753 : vector<1x128xf32> to vector<8x128xf32>
    %755 = arith.select %750, %752, %754 : vector<8x128xi1>, vector<8x128xf32>
    %756 = vector.shape_cast %729 : vector<8x1xi1> to vector<8x1xi1>
    %757 = vector.broadcast %756 : vector<8x1xi1> to vector<8x128xi1>
    %758 = vector.shape_cast %52 : vector<1x128xf32> to vector<1x128xf32>
    %759 = vector.broadcast %758 : vector<1x128xf32> to vector<8x128xf32>
    %760 = vector.shape_cast %51 : vector<1x128xf32> to vector<1x128xf32>
    %761 = vector.broadcast %760 : vector<1x128xf32> to vector<8x128xf32>
    %762 = arith.select %757, %759, %761 : vector<8x128xi1>, vector<8x128xf32>
    %763 = vector.shape_cast %729 : vector<8x1xi1> to vector<8x1xi1>
    %764 = vector.broadcast %763 : vector<8x1xi1> to vector<8x128xi1>
    %765 = vector.shape_cast %54 : vector<1x128xf32> to vector<1x128xf32>
    %766 = vector.broadcast %765 : vector<1x128xf32> to vector<8x128xf32>
    %767 = vector.shape_cast %53 : vector<1x128xf32> to vector<1x128xf32>
    %768 = vector.broadcast %767 : vector<1x128xf32> to vector<8x128xf32>
    %769 = arith.select %764, %766, %768 : vector<8x128xi1>, vector<8x128xf32>
    %770 = vector.shape_cast %729 : vector<8x1xi1> to vector<8x1xi1>
    %771 = vector.broadcast %770 : vector<8x1xi1> to vector<8x128xi1>
    %772 = vector.shape_cast %56 : vector<1x128xf32> to vector<1x128xf32>
    %773 = vector.broadcast %772 : vector<1x128xf32> to vector<8x128xf32>
    %774 = vector.shape_cast %55 : vector<1x128xf32> to vector<1x128xf32>
    %775 = vector.broadcast %774 : vector<1x128xf32> to vector<8x128xf32>
    %776 = arith.select %771, %773, %775 : vector<8x128xi1>, vector<8x128xf32>
    %777 = vector.shape_cast %729 : vector<8x1xi1> to vector<8x1xi1>
    %778 = vector.broadcast %777 : vector<8x1xi1> to vector<8x128xi1>
    %779 = vector.shape_cast %58 : vector<1x128xf32> to vector<1x128xf32>
    %780 = vector.broadcast %779 : vector<1x128xf32> to vector<8x128xf32>
    %781 = vector.shape_cast %57 : vector<1x128xf32> to vector<1x128xf32>
    %782 = vector.broadcast %781 : vector<1x128xf32> to vector<8x128xf32>
    %783 = arith.select %778, %780, %782 : vector<8x128xi1>, vector<8x128xf32>
    %784 = vector.shape_cast %729 : vector<8x1xi1> to vector<8x1xi1>
    %785 = vector.broadcast %784 : vector<8x1xi1> to vector<8x128xi1>
    %786 = vector.shape_cast %60 : vector<1x128xf32> to vector<1x128xf32>
    %787 = vector.broadcast %786 : vector<1x128xf32> to vector<8x128xf32>
    %788 = vector.shape_cast %59 : vector<1x128xf32> to vector<1x128xf32>
    %789 = vector.broadcast %788 : vector<1x128xf32> to vector<8x128xf32>
    %790 = arith.select %785, %787, %789 : vector<8x128xi1>, vector<8x128xf32>
    %791 = vector.shape_cast %729 : vector<8x1xi1> to vector<8x1xi1>
    %792 = vector.broadcast %791 : vector<8x1xi1> to vector<8x128xi1>
    %793 = vector.shape_cast %62 : vector<1x128xf32> to vector<1x128xf32>
    %794 = vector.broadcast %793 : vector<1x128xf32> to vector<8x128xf32>
    %795 = vector.shape_cast %61 : vector<1x128xf32> to vector<1x128xf32>
    %796 = vector.broadcast %795 : vector<1x128xf32> to vector<8x128xf32>
    %797 = arith.select %792, %794, %796 : vector<8x128xi1>, vector<8x128xf32>
    %798 = vector.shape_cast %733 : vector<8x1xi1> to vector<8x1xi1>
    %799 = vector.broadcast %798 : vector<8x1xi1> to vector<8x128xi1>
    %800 = arith.select %799, %755, %748 : vector<8x128xi1>, vector<8x128xf32>
    %801 = vector.shape_cast %733 : vector<8x1xi1> to vector<8x1xi1>
    %802 = vector.broadcast %801 : vector<8x1xi1> to vector<8x128xi1>
    %803 = arith.select %802, %769, %762 : vector<8x128xi1>, vector<8x128xf32>
    %804 = vector.shape_cast %733 : vector<8x1xi1> to vector<8x1xi1>
    %805 = vector.broadcast %804 : vector<8x1xi1> to vector<8x128xi1>
    %806 = arith.select %805, %783, %776 : vector<8x128xi1>, vector<8x128xf32>
    %807 = vector.shape_cast %733 : vector<8x1xi1> to vector<8x1xi1>
    %808 = vector.broadcast %807 : vector<8x1xi1> to vector<8x128xi1>
    %809 = arith.select %808, %797, %790 : vector<8x128xi1>, vector<8x128xf32>
    %810 = vector.shape_cast %737 : vector<8x1xi1> to vector<8x1xi1>
    %811 = vector.broadcast %810 : vector<8x1xi1> to vector<8x128xi1>
    %812 = arith.select %811, %803, %800 : vector<8x128xi1>, vector<8x128xf32>
    %813 = vector.shape_cast %737 : vector<8x1xi1> to vector<8x1xi1>
    %814 = vector.broadcast %813 : vector<8x1xi1> to vector<8x128xi1>
    %815 = arith.select %814, %809, %806 : vector<8x128xi1>, vector<8x128xf32>
    %816 = vector.shape_cast %741 : vector<8x1xi1> to vector<8x1xi1>
    %817 = vector.broadcast %816 : vector<8x1xi1> to vector<8x128xi1>
    %818 = arith.select %817, %815, %812 : vector<8x128xi1>, vector<8x128xf32>
    %819 = vector.extract_strided_slice %714 {offsets = [0, 0], sizes = [8, 128], strides = [1, 1]} : vector<8x144xf32> to vector<8x128xf32>
    %820 = arith.addf %818, %819 : vector<8x128xf32>
    %821 = arith.negf %820 : vector<8x128xf32>
    %822 = math.exp %821 : vector<8x128xf32>
    %cst_103 = arith.constant 1.000000e+00 : f32
    %823 = vector.broadcast %cst_103 : f32 to vector<8x128xf32>
    %824 = arith.addf %823, %822 : vector<8x128xf32>
    %825 = arith.divf %823, %824 : vector<8x128xf32>
    %826 = math.tanh %820 : vector<8x128xf32>
    %827 = vector.extract_strided_slice %825 {offsets = [0, 0], sizes = [8, 32], strides = [1, 1]} : vector<8x128xf32> to vector<8x32xf32>
    %828 = vector.extract_strided_slice %825 {offsets = [0, 32], sizes = [8, 32], strides = [1, 1]} : vector<8x128xf32> to vector<8x32xf32>
    %829 = vector.extract_strided_slice %826 {offsets = [0, 64], sizes = [8, 32], strides = [1, 1]} : vector<8x128xf32> to vector<8x32xf32>
    %830 = vector.extract_strided_slice %825 {offsets = [0, 96], sizes = [8, 32], strides = [1, 1]} : vector<8x128xf32> to vector<8x32xf32>
    %831 = arith.mulf %828, %708 : vector<8x32xf32>
    %832 = arith.mulf %827, %829 : vector<8x32xf32>
    %833 = arith.addf %831, %832 : vector<8x32xf32>
    %834 = math.tanh %833 : vector<8x32xf32>
    %835 = arith.mulf %830, %834 : vector<8x32xf32>
    %836 = arith.truncf %835 : vector<8x32xf32> to vector<8x32xbf16>
    %cst_104 = arith.constant dense<0.000000e+00> : vector<8x144xf32>
    %837 = tpu.matmul %836, %2, %cst_104 {dimension_numbers = #tpu.dot_dimension_numbers<[1], [0], [0], [1], [0, 0, 1, 1], [], []>} : vector<8x32xbf16>, vector<32x144xbf16>, vector<8x144xf32> -> vector<8x144xf32>
    %838 = vector.broadcast %4 : vector<1x144xf32> to vector<8x144xf32>
    %839 = arith.addf %837, %838 : vector<8x144xf32>
    %840 = vector.extract_strided_slice %839 {offsets = [0, 128], sizes = [8, 16], strides = [1, 1]} : vector<8x144xf32> to vector<8x16xf32>
    %c0_105 = arith.constant 0 : index
    %c96_106 = arith.constant 96 : index
    %841 = vector.load %arg2[%c0_105, %c96_106] : memref<8x128xf32, #tpu.memory_space<vmem>>, vector<8x16xf32>
    tpu.vector_store %arg2[%c0_105, %c96_106], %840 {strides = array<i32>} : memref<8x128xf32, #tpu.memory_space<vmem>>, vector<8x16xf32>,
    %cst_107 = arith.constant dense<0xFF800000> : vector<8xf32>
    %842 = vector.multi_reduction <maximumf>, %840, %cst_107 [1] : vector<8x16xf32> to vector<8xf32>
    %843 = vector.shape_cast %842 : vector<8xf32> to vector<8x1xf32>
    %844 = vector.broadcast %843 : vector<8x1xf32> to vector<8x16xf32>
    %845 = arith.cmpf oeq, %840, %844 : vector<8x16xf32>
    %c16_i32_108 = arith.constant 16 : i32
    %846 = vector.broadcast %c16_i32_108 : i32 to vector<8x16xi32>
    %847 = arith.select %845, %46, %846 : vector<8x16xi1>, vector<8x16xi32>
    %cst_109 = arith.constant dense<2147483647> : vector<8xi32>
    %848 = vector.multi_reduction <minsi>, %847, %cst_109 [1] : vector<8x16xi32> to vector<8xi32>
    %849 = vector.shape_cast %848 : vector<8xi32> to vector<8x1xi32>
    %c0_110 = arith.constant 0 : index
    %c6 = arith.constant 6 : index
    %850 = vector.load %arg3[%c0_110, %c6] : memref<8x8xi32, #tpu.memory_space<vmem>>, vector<8x1xi32>
    tpu.vector_store %arg3[%c0_110, %c6], %849 {strides = array<i32>} : memref<8x8xi32, #tpu.memory_space<vmem>>, vector<8x1xi32>,
    %c1_i32_111 = arith.constant 1 : i32
    %851 = vector.broadcast %c1_i32_111 : i32 to vector<8x1xi32>
    %852 = arith.andi %849, %851 : vector<8x1xi32>
    %c0_i32_112 = arith.constant 0 : i32
    %853 = vector.broadcast %c0_i32_112 : i32 to vector<8x1xi32>
    %854 = arith.cmpi ne, %852, %853 : vector<8x1xi32>
    %c2_i32_113 = arith.constant 2 : i32
    %855 = vector.broadcast %c2_i32_113 : i32 to vector<8x1xi32>
    %856 = arith.andi %849, %855 : vector<8x1xi32>
    %c0_i32_114 = arith.constant 0 : i32
    %857 = vector.broadcast %c0_i32_114 : i32 to vector<8x1xi32>
    %858 = arith.cmpi ne, %856, %857 : vector<8x1xi32>
    %c4_i32_115 = arith.constant 4 : i32
    %859 = vector.broadcast %c4_i32_115 : i32 to vector<8x1xi32>
    %860 = arith.andi %849, %859 : vector<8x1xi32>
    %c0_i32_116 = arith.constant 0 : i32
    %861 = vector.broadcast %c0_i32_116 : i32 to vector<8x1xi32>
    %862 = arith.cmpi ne, %860, %861 : vector<8x1xi32>
    %c8_i32_117 = arith.constant 8 : i32
    %863 = vector.broadcast %c8_i32_117 : i32 to vector<8x1xi32>
    %864 = arith.andi %849, %863 : vector<8x1xi32>
    %c0_i32_118 = arith.constant 0 : i32
    %865 = vector.broadcast %c0_i32_118 : i32 to vector<8x1xi32>
    %866 = arith.cmpi ne, %864, %865 : vector<8x1xi32>
    %867 = vector.shape_cast %854 : vector<8x1xi1> to vector<8x1xi1>
    %868 = vector.broadcast %867 : vector<8x1xi1> to vector<8x128xi1>
    %869 = vector.shape_cast %48 : vector<1x128xf32> to vector<1x128xf32>
    %870 = vector.broadcast %869 : vector<1x128xf32> to vector<8x128xf32>
    %871 = vector.shape_cast %47 : vector<1x128xf32> to vector<1x128xf32>
    %872 = vector.broadcast %871 : vector<1x128xf32> to vector<8x128xf32>
    %873 = arith.select %868, %870, %872 : vector<8x128xi1>, vector<8x128xf32>
    %874 = vector.shape_cast %854 : vector<8x1xi1> to vector<8x1xi1>
    %875 = vector.broadcast %874 : vector<8x1xi1> to vector<8x128xi1>
    %876 = vector.shape_cast %50 : vector<1x128xf32> to vector<1x128xf32>
    %877 = vector.broadcast %876 : vector<1x128xf32> to vector<8x128xf32>
    %878 = vector.shape_cast %49 : vector<1x128xf32> to vector<1x128xf32>
    %879 = vector.broadcast %878 : vector<1x128xf32> to vector<8x128xf32>
    %880 = arith.select %875, %877, %879 : vector<8x128xi1>, vector<8x128xf32>
    %881 = vector.shape_cast %854 : vector<8x1xi1> to vector<8x1xi1>
    %882 = vector.broadcast %881 : vector<8x1xi1> to vector<8x128xi1>
    %883 = vector.shape_cast %52 : vector<1x128xf32> to vector<1x128xf32>
    %884 = vector.broadcast %883 : vector<1x128xf32> to vector<8x128xf32>
    %885 = vector.shape_cast %51 : vector<1x128xf32> to vector<1x128xf32>
    %886 = vector.broadcast %885 : vector<1x128xf32> to vector<8x128xf32>
    %887 = arith.select %882, %884, %886 : vector<8x128xi1>, vector<8x128xf32>
    %888 = vector.shape_cast %854 : vector<8x1xi1> to vector<8x1xi1>
    %889 = vector.broadcast %888 : vector<8x1xi1> to vector<8x128xi1>
    %890 = vector.shape_cast %54 : vector<1x128xf32> to vector<1x128xf32>
    %891 = vector.broadcast %890 : vector<1x128xf32> to vector<8x128xf32>
    %892 = vector.shape_cast %53 : vector<1x128xf32> to vector<1x128xf32>
    %893 = vector.broadcast %892 : vector<1x128xf32> to vector<8x128xf32>
    %894 = arith.select %889, %891, %893 : vector<8x128xi1>, vector<8x128xf32>
    %895 = vector.shape_cast %854 : vector<8x1xi1> to vector<8x1xi1>
    %896 = vector.broadcast %895 : vector<8x1xi1> to vector<8x128xi1>
    %897 = vector.shape_cast %56 : vector<1x128xf32> to vector<1x128xf32>
    %898 = vector.broadcast %897 : vector<1x128xf32> to vector<8x128xf32>
    %899 = vector.shape_cast %55 : vector<1x128xf32> to vector<1x128xf32>
    %900 = vector.broadcast %899 : vector<1x128xf32> to vector<8x128xf32>
    %901 = arith.select %896, %898, %900 : vector<8x128xi1>, vector<8x128xf32>
    %902 = vector.shape_cast %854 : vector<8x1xi1> to vector<8x1xi1>
    %903 = vector.broadcast %902 : vector<8x1xi1> to vector<8x128xi1>
    %904 = vector.shape_cast %58 : vector<1x128xf32> to vector<1x128xf32>
    %905 = vector.broadcast %904 : vector<1x128xf32> to vector<8x128xf32>
    %906 = vector.shape_cast %57 : vector<1x128xf32> to vector<1x128xf32>
    %907 = vector.broadcast %906 : vector<1x128xf32> to vector<8x128xf32>
    %908 = arith.select %903, %905, %907 : vector<8x128xi1>, vector<8x128xf32>
    %909 = vector.shape_cast %854 : vector<8x1xi1> to vector<8x1xi1>
    %910 = vector.broadcast %909 : vector<8x1xi1> to vector<8x128xi1>
    %911 = vector.shape_cast %60 : vector<1x128xf32> to vector<1x128xf32>
    %912 = vector.broadcast %911 : vector<1x128xf32> to vector<8x128xf32>
    %913 = vector.shape_cast %59 : vector<1x128xf32> to vector<1x128xf32>
    %914 = vector.broadcast %913 : vector<1x128xf32> to vector<8x128xf32>
    %915 = arith.select %910, %912, %914 : vector<8x128xi1>, vector<8x128xf32>
    %916 = vector.shape_cast %854 : vector<8x1xi1> to vector<8x1xi1>
    %917 = vector.broadcast %916 : vector<8x1xi1> to vector<8x128xi1>
    %918 = vector.shape_cast %62 : vector<1x128xf32> to vector<1x128xf32>
    %919 = vector.broadcast %918 : vector<1x128xf32> to vector<8x128xf32>
    %920 = vector.shape_cast %61 : vector<1x128xf32> to vector<1x128xf32>
    %921 = vector.broadcast %920 : vector<1x128xf32> to vector<8x128xf32>
    %922 = arith.select %917, %919, %921 : vector<8x128xi1>, vector<8x128xf32>
    %923 = vector.shape_cast %858 : vector<8x1xi1> to vector<8x1xi1>
    %924 = vector.broadcast %923 : vector<8x1xi1> to vector<8x128xi1>
    %925 = arith.select %924, %880, %873 : vector<8x128xi1>, vector<8x128xf32>
    %926 = vector.shape_cast %858 : vector<8x1xi1> to vector<8x1xi1>
    %927 = vector.broadcast %926 : vector<8x1xi1> to vector<8x128xi1>
    %928 = arith.select %927, %894, %887 : vector<8x128xi1>, vector<8x128xf32>
    %929 = vector.shape_cast %858 : vector<8x1xi1> to vector<8x1xi1>
    %930 = vector.broadcast %929 : vector<8x1xi1> to vector<8x128xi1>
    %931 = arith.select %930, %908, %901 : vector<8x128xi1>, vector<8x128xf32>
    %932 = vector.shape_cast %858 : vector<8x1xi1> to vector<8x1xi1>
    %933 = vector.broadcast %932 : vector<8x1xi1> to vector<8x128xi1>
    %934 = arith.select %933, %922, %915 : vector<8x128xi1>, vector<8x128xf32>
    %935 = vector.shape_cast %862 : vector<8x1xi1> to vector<8x1xi1>
    %936 = vector.broadcast %935 : vector<8x1xi1> to vector<8x128xi1>
    %937 = arith.select %936, %928, %925 : vector<8x128xi1>, vector<8x128xf32>
    %938 = vector.shape_cast %862 : vector<8x1xi1> to vector<8x1xi1>
    %939 = vector.broadcast %938 : vector<8x1xi1> to vector<8x128xi1>
    %940 = arith.select %939, %934, %931 : vector<8x128xi1>, vector<8x128xf32>
    %941 = vector.shape_cast %866 : vector<8x1xi1> to vector<8x1xi1>
    %942 = vector.broadcast %941 : vector<8x1xi1> to vector<8x128xi1>
    %943 = arith.select %942, %940, %937 : vector<8x128xi1>, vector<8x128xf32>
    %944 = vector.extract_strided_slice %839 {offsets = [0, 0], sizes = [8, 128], strides = [1, 1]} : vector<8x144xf32> to vector<8x128xf32>
    %945 = arith.addf %943, %944 : vector<8x128xf32>
    %946 = arith.negf %945 : vector<8x128xf32>
    %947 = math.exp %946 : vector<8x128xf32>
    %cst_119 = arith.constant 1.000000e+00 : f32
    %948 = vector.broadcast %cst_119 : f32 to vector<8x128xf32>
    %949 = arith.addf %948, %947 : vector<8x128xf32>
    %950 = arith.divf %948, %949 : vector<8x128xf32>
    %951 = math.tanh %945 : vector<8x128xf32>
    %952 = vector.extract_strided_slice %950 {offsets = [0, 0], sizes = [8, 32], strides = [1, 1]} : vector<8x128xf32> to vector<8x32xf32>
    %953 = vector.extract_strided_slice %950 {offsets = [0, 32], sizes = [8, 32], strides = [1, 1]} : vector<8x128xf32> to vector<8x32xf32>
    %954 = vector.extract_strided_slice %951 {offsets = [0, 64], sizes = [8, 32], strides = [1, 1]} : vector<8x128xf32> to vector<8x32xf32>
    %955 = vector.extract_strided_slice %950 {offsets = [0, 96], sizes = [8, 32], strides = [1, 1]} : vector<8x128xf32> to vector<8x32xf32>
    %956 = arith.mulf %953, %833 : vector<8x32xf32>
    %957 = arith.mulf %952, %954 : vector<8x32xf32>
    %958 = arith.addf %956, %957 : vector<8x32xf32>
    %959 = math.tanh %958 : vector<8x32xf32>
    %960 = arith.mulf %955, %959 : vector<8x32xf32>
    %961 = arith.truncf %960 : vector<8x32xf32> to vector<8x32xbf16>
    %cst_120 = arith.constant dense<0.000000e+00> : vector<8x144xf32>
    %962 = tpu.matmul %961, %2, %cst_120 {dimension_numbers = #tpu.dot_dimension_numbers<[1], [0], [0], [1], [0, 0, 1, 1], [], []>} : vector<8x32xbf16>, vector<32x144xbf16>, vector<8x144xf32> -> vector<8x144xf32>
    %963 = vector.broadcast %4 : vector<1x144xf32> to vector<8x144xf32>
    %964 = arith.addf %962, %963 : vector<8x144xf32>
    %965 = vector.extract_strided_slice %964 {offsets = [0, 128], sizes = [8, 16], strides = [1, 1]} : vector<8x144xf32> to vector<8x16xf32>
    %c0_121 = arith.constant 0 : index
    %c112 = arith.constant 112 : index
    %966 = vector.load %arg2[%c0_121, %c112] : memref<8x128xf32, #tpu.memory_space<vmem>>, vector<8x16xf32>
    tpu.vector_store %arg2[%c0_121, %c112], %965 {strides = array<i32>} : memref<8x128xf32, #tpu.memory_space<vmem>>, vector<8x16xf32>,
    %cst_122 = arith.constant dense<0xFF800000> : vector<8xf32>
    %967 = vector.multi_reduction <maximumf>, %965, %cst_122 [1] : vector<8x16xf32> to vector<8xf32>
    %968 = vector.shape_cast %967 : vector<8xf32> to vector<8x1xf32>
    %969 = vector.broadcast %968 : vector<8x1xf32> to vector<8x16xf32>
    %970 = arith.cmpf oeq, %965, %969 : vector<8x16xf32>
    %c16_i32_123 = arith.constant 16 : i32
    %971 = vector.broadcast %c16_i32_123 : i32 to vector<8x16xi32>
    %972 = arith.select %970, %46, %971 : vector<8x16xi1>, vector<8x16xi32>
    %cst_124 = arith.constant dense<2147483647> : vector<8xi32>
    %973 = vector.multi_reduction <minsi>, %972, %cst_124 [1] : vector<8x16xi32> to vector<8xi32>
    %974 = vector.shape_cast %973 : vector<8xi32> to vector<8x1xi32>
    %c0_125 = arith.constant 0 : index
    %c7 = arith.constant 7 : index
    %975 = vector.load %arg3[%c0_125, %c7] : memref<8x8xi32, #tpu.memory_space<vmem>>, vector<8x1xi32>
    tpu.vector_store %arg3[%c0_125, %c7], %974 {strides = array<i32>} : memref<8x8xi32, #tpu.memory_space<vmem>>, vector<8x1xi32>,
    return
  }
}

</mosaic_0001>

<llo_original>
// kernel: discrete_sender_forward.1
$region0: #{discrete_sender_forward.1}
  #allocation0 [shape = 'u32[]', space=smem, size = 0x4, offset = 0x4, fixed_abs, tag = 'smem constant byte address 0x4 - core index']
  #allocation1 [shape = 'u32[72,128]{1,0:T(1,128)}', space=vmem, size = 0x9000, scoped, tag = 'internal scratch']
  %s0 = inlined_call_operand.vmem [shape: s32[8,4], index: 0, kind: input, shape index: {}]
  %s1 = inlined_call_operand.vmem [shape: f32[104,144], index: 1, kind: input, shape index: {}]
  %s2 = inlined_call_operand.vmem [shape: f32[8,128], index: 2, kind: output, shape index: {0}]
  %s3 = inlined_call_operand.hbm [shape: s32[8,8], index: 3, kind: output, shape index: {1}]
  %4 = xla_tuple %s2, %s3
  %s5 = sld [smem:[#allocation0]]
  $region26: #{discrete_sender_forward.1} parent=0
    _
  %s7 = ssub.s32 1, %s5
  %s8 = scalar_select 0, %s7, %s5
  $region1: #{discrete_sender_forward.1} parent=0
    #allocation2 [shape = 'u8[4096]{0}', space=vmem, size = 0x1000, scoped, tag = 'output window, operand 1, single buffered']
    #allocation3 [shape = 's32[1]{0}', space=sflag, size = 0x4, scoped, tag = 'scoped memory for discrete_sender_forward.1']
    %9 = vsyncpa [#allocation3], 0
    // Predicated region
    $region2: #{discrete_sender_forward.1} parent=1 // pred_check
      _
    $region3: #{discrete_sender_forward.1} parent=1 // pred_check_branch
      %11 = sbr.rel (0) target = $region5
    $region4: #{discrete_sender_forward.1} parent=1 // pred_region
      _
    $region5: #{discrete_sender_forward.1} parent=1 // pred_fallthru
      _
    // Predicated region
    $region6: #{discrete_sender_forward.1} parent=1 // pred_check
      _
    $region7: #{discrete_sender_forward.1} parent=1 // pred_check_branch
      %13 = sbr.rel (0) target = $region9
    $region8: #{discrete_sender_forward.1} parent=1 // pred_region
      _
    $region9: #{discrete_sender_forward.1} parent=1 // pred_fallthru
      _
    %v15 = vld [vmem:[%s1] sm:$0xff]
    %v16 = vld [vmem:[%s1 + $0x10] sm:$0xff]
    %v17 = vld [vmem:[%s1 + $0x20] sm:$0xff]
    %v18 = vld [vmem:[%s1 + $0x30] sm:$0xff]
    %v19 = vld [vmem:[%s1 + $0x40] sm:$0xff]
    %v20 = vld [vmem:[%s1 + $0x48] sm:$0xff]
    %v21 = vld [vmem:[%s1 + $0x50] sm:$0xff]
    %v22 = vld [vmem:[%s1 + $0x58] sm:$0xff]
    %v23 = vld [vmem:[%s1 + $0x60] sm:$0xff]
    %v24 = vld [vmem:[%s1 + $0x68] sm:$0xff]
    %v25 = vld [vmem:[%s1 + $0x70] sm:$0xff]
    %v26 = vld [vmem:[%s1 + $0x78] sm:$0xff]
    %v27 = vpack.c.bf16 %v21, %v19
    %v28 = vpack.c.bf16 %v22, %v20
    %v29 = vpack.c.bf16 %v25, %v23
    %v30 = vpack.c.bf16 %v26, %v24
    %v31 = vld [vmem:[%s1 + $0x80] sm:$0xff]
    %v32 = vld [vmem:[%s1 + $0x90] sm:$0xff]
    %s33 = scalar_lea.vmem %s1, 160
    %v34 = vld [vmem:[%s33] ss:$8 sm:$0x3]
    %v35 = vld [vmem:[%s1 + $0xb0] ss:$0 sm:$0xff]
    %v36 = vld [vmem:[%s1 + $0xc0] ss:$0 sm:$0xff]
    %v37 = vld [vmem:[%s0] sm:$0xff]
    %v38 = vlaneseq
    %v39 = vand.u32 %v38, 127
    %40 = vset.pattern.permute.xlu0 0
    %41 = vperm.xlu0 %40, %v37
    %v42 = vpop.permute.xlu0 %41
    %vm43 = vcmp.eq.s32.totalorder %v39, %v42
    %v44 = vsel %vm43, 1, 0
    %v45 = vcvt.s32.f32 %v44
    %v46 = vadd.f32 %v45, 0.0
    %v47 = vadd.s32 %v37, 8
    %48 = vset.pattern.permute.xlu0 1
    %49 = vperm.xlu0 %48, %v47
    %v50 = vpop.permute.xlu0 %49
    %vm51 = vcmp.eq.s32.totalorder %v39, %v50
    %v52 = vsel %vm51, 1, 0
    %v53 = vcvt.s32.f32 %v52
    %v54 = vadd.f32 %v46, %v53
    %v55 = vadd.s32 %v37, 16
    %56 = vset.pattern.permute.xlu0 2
    %57 = vperm.xlu0 %56, %v55
    %v58 = vpop.permute.xlu0 %57
    %vm59 = vcmp.eq.s32.totalorder %v39, %v58
    %v60 = vsel %vm59, 1, 0
    %v61 = vcvt.s32.f32 %v60
    %v62 = vadd.f32 %v54, %v61
    %v63 = vadd.s32 %v37, 24
    %64 = vset.pattern.permute.xlu0 3
    %65 = vperm.xlu0 %64, %v63
    %v66 = vpop.permute.xlu0 %65
    %vm67 = vcmp.eq.s32.totalorder %v39, %v66
    %v68 = vsel %vm67, 1, 0
    %v69 = vcvt.s32.f32 %v68
    %v70 = vadd.f32 %v62, %v69
    %vm71 = vcmask 261120
    %v73 = vsel %vm71, %v70, 0
    %75 = vmatpush.msra.mxu0 0.0
    %76 = vmatpush.msra.mxu0 0.0
    %77 = vmatpush.msra.mxu0 0.0
    %78 = vmatpush.msra.mxu0 0.0
    %79 = vmatpush.msra.mxu0 0.0
    %80 = vmatpush.msra.mxu0 0.0
    %81 = vmatpush.msra.mxu0 0.0
    %82 = vmatpush.msra.mxu0 0.0
    %83 = vmatpush.msra.mxu0 0.0
    %84 = vmatpush.msra.mxu0 0.0
    %85 = vmatpush.msra.mxu0 0.0
    %86 = vmatpush.msra.mxu0 0.0
    %87 = vmatpush.msra.mxu0 %v18
    %88 = vmatpush.msra.mxu0 %v17
    %89 = vmatpush.msra.mxu0 %v16
    %90 = vmatpush.msra.mxu0 %v15
    %91 = vmatmul.f32.gmra.mxu0 %v73
    %v92 = vpop.f32.mrf.mxu0
    %v93 = vadd.f32 %v35, %v92
    %94 = vdwg.mxu0
    %v95 = vpack.c.bf16 %v93, %v93
    %v97 = vperm.slane %v34, 0
    %v98 = vperm.slane %v34, 1
    %v102 = vsel %vm71, %v95, 0
    %104 = vmatpush.bf16.msra.mxu0 0
    %105 = vmatpush.bf16.msra.mxu0 0
    %106 = vmatpush.bf16.msra.mxu0 0
    %107 = vmatpush.bf16.msra.mxu0 0
    %108 = vmatpush.bf16.msra.mxu0 0
    %109 = vmatpush.bf16.msra.mxu0 0
    %110 = vmatpush.bf16.msra.mxu0 %v29
    %111 = vmatpush.bf16.msra.mxu0 %v27
    %112 = vmatmul.bf16.gmra.mxu0 %v102
    %v113 = vpop.f32.mrf.mxu0
    %v114 = vadd.f32 %v97, %v113
    %v115 = vpop.f32.mrf.mxu0
    %116 = vdwg.mxu0
    %v117 = vadd.f32 %v36, %v114
    %v118 = vxor.u32 %v117, 2147483648
    %v119 = vmul.f32 %v118, 1.442695
    %v120 = vpow.pop %v119
    %v121 = vadd.f32 %v120, 1.0
    %v122 = vrcp.pop %v121
    %v123 = vmul.f32 %v121, %v122
    %v124 = vsub.f32 1.0, %v123
    %v125 = vmul.f32 %v122, %v124
    %v126 = vadd.f32 %v122, %v125
    %vm127 = vweird.f32 %v121
    %vm128 = vweird.f32 %v122
    %vm129 = vmor %vm127, %vm128
    %v130 = vsel %vm129, %v122, %v126
    %v131 = vand.u32 2147483647, %v121
    %vm132 = vcmp.eq.f32.partialorder %v131, 8.507059e+37
    %v133 = vand.u32 %v121, 2147483648
    %v134 = vor.u32 1.1754944e-38, %v133
    %v135 = vsel %vm132, %v134, %v130
    %v136 = vmul.f32 1.0, %v135
    %v137 = vtanh.pop %v117
    %v138 = vmul.f32 %v136, 0.0
    %140 = vrot.lane.b32.xlu0 %v137, 64
    %v141 = vpop.permute.xlu0 %140
    %v143 = vmul.f32 %v136, %v141
    %145 = vrot.lane.b32.xlu0 %v143, 32
    %v146 = vpop.permute.xlu0 %145
    %v148 = vadd.f32 %v138, %v146
    %v149 = vtanh.pop %v148
    %151 = vrot.lane.b32.xlu0 %v149, 64
    %v152 = vpop.permute.xlu0 %151
    %v154 = vmul.f32 %v136, %v152
    %v155 = vpack.c.bf16 %v154, %v154
    %157 = vrot.lane.b32.xlu0 %v155, 32
    %v158 = vpop.permute.xlu0 %157
    %v160 = vsel %vm71, %v158, 0
    %162 = vmatpush.bf16.msra.mxu0 0
    %163 = vmatpush.bf16.msra.mxu0 0
    %164 = vmatpush.bf16.msra.mxu0 0
    %165 = vmatpush.bf16.msra.mxu0 0
    %166 = vmatpush.bf16.msra.mxu0 0
    %167 = vmatpush.bf16.msra.mxu0 0
    %168 = vmatpush.bf16.msra.mxu0 %v29
    %169 = vmatpush.bf16.msra.mxu0 %v27
    %170 = vmatmul.bf16.gmra.mxu0 %v160
    %v171 = vpop.f32.mrf.mxu0
    %v172 = vadd.f32 %v97, %v171
    %v173 = vpop.f32.mrf.mxu0
    %174 = vdwg.mxu0
    %175 = vmatpush.bf16.msra.mxu0 0
    %176 = vmatpush.bf16.msra.mxu0 0
    %177 = vmatpush.bf16.msra.mxu0 0
    %178 = vmatpush.bf16.msra.mxu0 0
    %179 = vmatpush.bf16.msra.mxu0 0
    %180 = vmatpush.bf16.msra.mxu0 0
    %181 = vmatpush.bf16.msra.mxu0 %v30
    %182 = vmatpush.bf16.msra.mxu0 %v28
    %183 = vmatmul.bf16.gmra.mxu0 %v160
    %v184 = vpop.f32.mrf.mxu0
    %v185 = vadd.f32 %v98, %v184
    %v186 = vpop.f32.mrf.mxu0
    %187 = vdwg.mxu0
    %vm188 = vcmask 130048
    %189 = vst.msk [vmem:[%s2] sm:$0xff] %vm188, %v185
    %v190 = vsel %vm188, %v185, -inf
    %191 = vmax.xlane.f32.xlu0 %v190
    %v192 = vpop.xlane.xlu0 %191
    %vm193 = vcmp.eq.f32.partialorder %v185, %v192
    %v194 = vsel %vm193, %v39, 16
    %v195 = vsel %vm188, %v194, 2147483647
    %v196 = vand.u32 %v195, 65535
    %v197 = vshra.s32 %v195, 16
    %v198 = vcvt.s32.f32 %v196
    %v199 = vcvt.s32.f32 %v197
    %200 = vmin.xlane.f32.xlu0 %v199
    %v201 = vpop.xlane.xlu0 %200
    %vm202 = vcmp.eq.f32.partialorder %v199, %v201
    %v203 = vsel %vm202, %v198, inf
    %204 = vmin.xlane.f32.xlu0 %v203
    %v205 = vpop.xlane.xlu0 %204
    %v206 = vcvt.f32.s32 %v205
    %v207 = vcvt.f32.s32 %v201
    %v208 = vshll.u32 %v207, 16
    %v209 = vadd.s32 %v208, %v206
    %vm210 = vcmask 7168
    %211 = vst.msk [vmem:[#allocation2] sm:$0xff] %vm210, %v209
    %v212 = vand.u32 %v209, 1
    %vm213 = vcmp.ne.s32.totalorder %v212, 0
    %v214 = vand.u32 %v209, 2
    %vm215 = vcmp.ne.s32.totalorder %v214, 0
    %v216 = vand.u32 %v209, 4
    %vm217 = vcmp.ne.s32.totalorder %v216, 0
    %v218 = vand.u32 %v209, 8
    %vm219 = vcmp.ne.s32.totalorder %v218, 0
    %v220 = vsel %vm213, 1, 0
    %vm221 = vcmp.eq.s32.totalorder %v220, 1
    %v222 = vperm.slane %v31, 1
    %v223 = vperm.slane %v31, 0
    %v224 = vsel %vm221, %v222, %v223
    %v225 = vperm.slane %v31, 3
    %v226 = vperm.slane %v31, 2
    %v227 = vsel %vm221, %v225, %v226
    %v228 = vperm.slane %v31, 5
    %v229 = vperm.slane %v31, 4
    %v230 = vsel %vm221, %v228, %v229
    %v231 = vperm.slane %v31, 7
    %v232 = vperm.slane %v31, 6
    %v233 = vsel %vm221, %v231, %v232
    %v234 = vperm.slane %v32, 1
    %v235 = vperm.slane %v32, 0
    %v236 = vsel %vm221, %v234, %v235
    %v237 = vperm.slane %v32, 3
    %v238 = vperm.slane %v32, 2
    %v239 = vsel %vm221, %v237, %v238
    %v240 = vperm.slane %v32, 5
    %v241 = vperm.slane %v32, 4
    %v242 = vsel %vm221, %v240, %v241
    %v243 = vperm.slane %v32, 7
    %v244 = vperm.slane %v32, 6
    %v245 = vsel %vm221, %v243, %v244
    %v246 = vsel %vm215, 1, 0
    %vm247 = vcmp.eq.s32.totalorder %v246, 1
    %v248 = vsel %vm247, %v227, %v224
    %v249 = vsel %vm247, %v233, %v230
    %v250 = vsel %vm247, %v239, %v236
    %v251 = vsel %vm247, %v245, %v242
    %v252 = vsel %vm217, 1, 0
    %vm253 = vcmp.eq.s32.totalorder %v252, 1
    %v254 = vsel %vm253, %v249, %v248
    %v255 = vsel %vm253, %v251, %v250
    %v256 = vsel %vm219, 1, 0
    %vm257 = vcmp.eq.s32.totalorder %v256, 1
    %v258 = vsel %vm257, %v255, %v254
    %v259 = vadd.f32 %v258, %v172
    %v260 = vxor.u32 %v259, 2147483648
    %v261 = vmul.f32 %v260, 1.442695
    %v262 = vpow.pop %v261
    %v263 = vadd.f32 %v262, 1.0
    %v264 = vrcp.pop %v263
    %v265 = vmul.f32 %v263, %v264
    %v266 = vsub.f32 1.0, %v265
    %v267 = vmul.f32 %v264, %v266
    %v268 = vadd.f32 %v264, %v267
    %vm269 = vweird.f32 %v263
    %vm270 = vweird.f32 %v264
    %vm271 = vmor %vm269, %vm270
    %v272 = vsel %vm271, %v264, %v268
    %v273 = vand.u32 2147483647, %v263
    %vm274 = vcmp.eq.f32.partialorder %v273, 8.507059e+37
    %v275 = vand.u32 %v263, 2147483648
    %v276 = vor.u32 1.1754944e-38, %v275
    %v277 = vsel %vm274, %v276, %v272
    %v278 = vmul.f32 1.0, %v277
    %v279 = vtanh.pop %v259
    %v280 = vmul.f32 %v278, %v148
    %282 = vrot.lane.b32.xlu0 %v279, 64
    %v283 = vpop.permute.xlu0 %282
    %v285 = vmul.f32 %v278, %v283
    %287 = vrot.lane.b32.xlu0 %v285, 32
    %v288 = vpop.permute.xlu0 %287
    %v290 = vadd.f32 %v280, %v288
    %v291 = vtanh.pop %v290
    %293 = vrot.lane.b32.xlu0 %v291, 64
    %v294 = vpop.permute.xlu0 %293
    %v296 = vmul.f32 %v278, %v294
    %v297 = vpack.c.bf16 %v296, %v296
    %299 = vrot.lane.b32.xlu0 %v297, 32
    %v300 = vpop.permute.xlu0 %299
    %v302 = vsel %vm71, %v300, 0
    %304 = vmatpush.bf16.msra.mxu0 0
    %305 = vmatpush.bf16.msra.mxu0 0
    %306 = vmatpush.bf16.msra.mxu0 0
    %307 = vmatpush.bf16.msra.mxu0 0
    %308 = vmatpush.bf16.msra.mxu0 0
    %309 = vmatpush.bf16.msra.mxu0 0
    %310 = vmatpush.bf16.msra.mxu0 %v29
    %311 = vmatpush.bf16.msra.mxu0 %v27
    %312 = vmatmul.bf16.gmra.mxu0 %v302
    %v313 = vpop.f32.mrf.mxu0
    %v314 = vadd.f32 %v97, %v313
    %v315 = vpop.f32.mrf.mxu0
    %316 = vdwg.mxu0
    %317 = vmatpush.bf16.msra.mxu0 0
    %318 = vmatpush.bf16.msra.mxu0 0
    %319 = vmatpush.bf16.msra.mxu0 0
    %320 = vmatpush.bf16.msra.mxu0 0
    %321 = vmatpush.bf16.msra.mxu0 0
    %322 = vmatpush.bf16.msra.mxu0 0
    %323 = vmatpush.bf16.msra.mxu0 %v30
    %324 = vmatpush.bf16.msra.mxu0 %v28
    %325 = vmatmul.bf16.gmra.mxu0 %v302
    %v326 = vpop.f32.mrf.mxu0
    %v327 = vadd.f32 %v98, %v326
    %v328 = vpop.f32.mrf.mxu0
    %329 = vdwg.mxu0
    %331 = vrot.lane.b32.xlu0 %v327, 16
    %v332 = vpop.permute.xlu0 %331
    %vm334 = vcmask 261248
    %335 = vst.msk [vmem:[%s2] sm:$0xff] %vm334, %v332
    %v336 = vsel %vm188, %v327, -inf
    %337 = vmax.xlane.f32.xlu0 %v336
    %v338 = vpop.xlane.xlu0 %337
    %vm339 = vcmp.eq.f32.partialorder %v327, %v338
    %v340 = vsel %vm339, %v39, 16
    %v341 = vsel %vm188, %v340, 2147483647
    %v342 = vand.u32 %v341, 65535
    %v343 = vshra.s32 %v341, 16
    %v344 = vcvt.s32.f32 %v342
    %v345 = vcvt.s32.f32 %v343
    %346 = vmin.xlane.f32.xlu0 %v345
    %v347 = vpop.xlane.xlu0 %346
    %vm348 = vcmp.eq.f32.partialorder %v345, %v347
    %v349 = vsel %vm348, %v344, inf
    %350 = vmin.xlane.f32.xlu0 %v349
    %v351 = vpop.xlane.xlu0 %350
    %v352 = vcvt.f32.s32 %v351
    %v353 = vcvt.f32.s32 %v347
    %v354 = vshll.u32 %v353, 16
    %v355 = vadd.s32 %v354, %v352
    %vm356 = vcmask 15368
    %357 = vst.msk [vmem:[#allocation2] sm:$0xff] %vm356, %v355
    %v358 = vand.u32 %v355, 1
    %vm359 = vcmp.ne.s32.totalorder %v358, 0
    %v360 = vand.u32 %v355, 2
    %vm361 = vcmp.ne.s32.totalorder %v360, 0
    %v362 = vand.u32 %v355, 4
    %vm363 = vcmp.ne.s32.totalorder %v362, 0
    %v364 = vand.u32 %v355, 8
    %vm365 = vcmp.ne.s32.totalorder %v364, 0
    %v366 = vsel %vm359, 1, 0
    %vm367 = vcmp.eq.s32.totalorder %v366, 1
    %v368 = vsel %vm367, %v222, %v223
    %v369 = vsel %vm367, %v225, %v226
    %v370 = vsel %vm367, %v228, %v229
    %v371 = vsel %vm367, %v231, %v232
    %v372 = vsel %vm367, %v234, %v235
    %v373 = vsel %vm367, %v237, %v238
    %v374 = vsel %vm367, %v240, %v241
    %v375 = vsel %vm367, %v243, %v244
    %v376 = vsel %vm361, 1, 0
    %vm377 = vcmp.eq.s32.totalorder %v376, 1
    %v378 = vsel %vm377, %v369, %v368
    %v379 = vsel %vm377, %v371, %v370
    %v380 = vsel %vm377, %v373, %v372
    %v381 = vsel %vm377, %v375, %v374
    %v382 = vsel %vm363, 1, 0
    %vm383 = vcmp.eq.s32.totalorder %v382, 1
    %v384 = vsel %vm383, %v379, %v378
    %v385 = vsel %vm383, %v381, %v380
    %v386 = vsel %vm365, 1, 0
    %vm387 = vcmp.eq.s32.totalorder %v386, 1
    %v388 = vsel %vm387, %v385, %v384
    %v389 = vadd.f32 %v388, %v314
    %v390 = vxor.u32 %v389, 2147483648
    %v391 = vmul.f32 %v390, 1.442695
    %v392 = vpow.pop %v391
    %v393 = vadd.f32 %v392, 1.0
    %v394 = vrcp.pop %v393
    %v395 = vmul.f32 %v393, %v394
    %v396 = vsub.f32 1.0, %v395
    %v397 = vmul.f32 %v394, %v396
    %v398 = vadd.f32 %v394, %v397
    %vm399 = vweird.f32 %v393
    %vm400 = vweird.f32 %v394
    %vm401 = vmor %vm399, %vm400
    %v402 = vsel %vm401, %v394, %v398
    %v403 = vand.u32 2147483647, %v393
    %vm404 = vcmp.eq.f32.partialorder %v403, 8.507059e+37
    %v405 = vand.u32 %v393, 2147483648
    %v406 = vor.u32 1.1754944e-38, %v405
    %v407 = vsel %vm404, %v406, %v402
    %v408 = vmul.f32 1.0, %v407
    %v409 = vtanh.pop %v389
    %v410 = vmul.f32 %v408, %v290
    %412 = vrot.lane.b32.xlu0 %v409, 64
    %v413 = vpop.permute.xlu0 %412
    %v415 = vmul.f32 %v408, %v413
    %417 = vrot.lane.b32.xlu0 %v415, 32
    %v418 = vpop.permute.xlu0 %417
    %v420 = vadd.f32 %v410, %v418
    %v421 = vtanh.pop %v420
    %423 = vrot.lane.b32.xlu0 %v421, 64
    %v424 = vpop.permute.xlu0 %423
    %v426 = vmul.f32 %v408, %v424
    %v427 = vpack.c.bf16 %v426, %v426
    %429 = vrot.lane.b32.xlu0 %v427, 32
    %v430 = vpop.permute.xlu0 %429
    %v432 = vsel %vm71, %v430, 0
    %434 = vmatpush.bf16.msra.mxu0 0
    %435 = vmatpush.bf16.msra.mxu0 0
    %436 = vmatpush.bf16.msra.mxu0 0
    %437 = vmatpush.bf16.msra.mxu0 0
    %438 = vmatpush.bf16.msra.mxu0 0
    %439 = vmatpush.bf16.msra.mxu0 0
    %440 = vmatpush.bf16.msra.mxu0 %v29
    %441 = vmatpush.bf16.msra.mxu0 %v27
    %442 = vmatmul.bf16.gmra.mxu0 %v432
    %v443 = vpop.f32.mrf.mxu0
    %v444 = vadd.f32 %v97, %v443
    %v445 = vpop.f32.mrf.mxu0
    %446 = vdwg.mxu0
    %447 = vmatpush.bf16.msra.mxu0 0
    %448 = vmatpush.bf16.msra.mxu0 0
    %449 = vmatpush.bf16.msra.mxu0 0
    %450 = vmatpush.bf16.msra.mxu0 0
    %451 = vmatpush.bf16.msra.mxu0 0
    %452 = vmatpush.bf16.msra.mxu0 0
    %453 = vmatpush.bf16.msra.mxu0 %v30
    %454 = vmatpush.bf16.msra.mxu0 %v28
    %455 = vmatmul.bf16.gmra.mxu0 %v432
    %v456 = vpop.f32.mrf.mxu0
    %v457 = vadd.f32 %v98, %v456
    %v458 = vpop.f32.mrf.mxu0
    %459 = vdwg.mxu0
    %461 = vrot.lane.b32.xlu0 %v457, 32
    %v462 = vpop.permute.xlu0 %461
    %vm464 = vcmask 392448
    %465 = vst.msk [vmem:[%s2] sm:$0xff] %vm464, %v462
    %v466 = vsel %vm188, %v457, -inf
    %467 = vmax.xlane.f32.xlu0 %v466
    %v468 = vpop.xlane.xlu0 %467
    %vm469 = vcmp.eq.f32.partialorder %v457, %v468
    %v470 = vsel %vm469, %v39, 16
    %v471 = vsel %vm188, %v470, 2147483647
    %v472 = vand.u32 %v471, 65535
    %v473 = vshra.s32 %v471, 16
    %v474 = vcvt.s32.f32 %v472
    %v475 = vcvt.s32.f32 %v473
    %476 = vmin.xlane.f32.xlu0 %v475
    %v477 = vpop.xlane.xlu0 %476
    %vm478 = vcmp.eq.f32.partialorder %v475, %v477
    %v479 = vsel %vm478, %v474, inf
    %480 = vmin.xlane.f32.xlu0 %v479
    %v481 = vpop.xlane.xlu0 %480
    %v482 = vcvt.f32.s32 %v481
    %v483 = vcvt.f32.s32 %v477
    %v484 = vshll.u32 %v483, 16
    %v485 = vadd.s32 %v484, %v482
    %vm486 = vcmask 23568
    %487 = vst.msk [vmem:[#allocation2] sm:$0xff] %vm486, %v485
    %v488 = vand.u32 %v485, 1
    %vm489 = vcmp.ne.s32.totalorder %v488, 0
    %v490 = vand.u32 %v485, 2
    %vm491 = vcmp.ne.s32.totalorder %v490, 0
    %v492 = vand.u32 %v485, 4
    %vm493 = vcmp.ne.s32.totalorder %v492, 0
    %v494 = vand.u32 %v485, 8
    %vm495 = vcmp.ne.s32.totalorder %v494, 0
    %v496 = vsel %vm489, 1, 0
    %vm497 = vcmp.eq.s32.totalorder %v496, 1
    %v498 = vsel %vm497, %v222, %v223
    %v499 = vsel %vm497, %v225, %v226
    %v500 = vsel %vm497, %v228, %v229
    %v501 = vsel %vm497, %v231, %v232
    %v502 = vsel %vm497, %v234, %v235
    %v503 = vsel %vm497, %v237, %v238
    %v504 = vsel %vm497, %v240, %v241
    %v505 = vsel %vm497, %v243, %v244
    %v506 = vsel %vm491, 1, 0
    %vm507 = vcmp.eq.s32.totalorder %v506, 1
    %v508 = vsel %vm507, %v499, %v498
    %v509 = vsel %vm507, %v501, %v500
    %v510 = vsel %vm507, %v503, %v502
    %v511 = vsel %vm507, %v505, %v504
    %v512 = vsel %vm493, 1, 0
    %vm513 = vcmp.eq.s32.totalorder %v512, 1
    %v514 = vsel %vm513, %v509, %v508
    %v515 = vsel %vm513, %v511, %v510
    %v516 = vsel %vm495, 1, 0
    %vm517 = vcmp.eq.s32.totalorder %v516, 1
    %v518 = vsel %vm517, %v515, %v514
    %v519 = vadd.f32 %v518, %v444
    %v520 = vxor.u32 %v519, 2147483648
    %v521 = vmul.f32 %v520, 1.442695
    %v522 = vpow.pop %v521
    %v523 = vadd.f32 %v522, 1.0
    %v524 = vrcp.pop %v523
    %v525 = vmul.f32 %v523, %v524
    %v526 = vsub.f32 1.0, %v525
    %v527 = vmul.f32 %v524, %v526
    %v528 = vadd.f32 %v524, %v527
    %vm529 = vweird.f32 %v523
    %vm530 = vweird.f32 %v524
    %vm531 = vmor %vm529, %vm530
    %v532 = vsel %vm531, %v524, %v528
    %v533 = vand.u32 2147483647, %v523
    %vm534 = vcmp.eq.f32.partialorder %v533, 8.507059e+37
    %v535 = vand.u32 %v523, 2147483648
    %v536 = vor.u32 1.1754944e-38, %v535
    %v537 = vsel %vm534, %v536, %v532
    %v538 = vmul.f32 1.0, %v537
    %v539 = vtanh.pop %v519
    %v540 = vmul.f32 %v538, %v420
    %542 = vrot.lane.b32.xlu0 %v539, 64
    %v543 = vpop.permute.xlu0 %542
    %v545 = vmul.f32 %v538, %v543
    %547 = vrot.lane.b32.xlu0 %v545, 32
    %v548 = vpop.permute.xlu0 %547
    %v550 = vadd.f32 %v540, %v548
    %v551 = vtanh.pop %v550
    %553 = vrot.lane.b32.xlu0 %v551, 64
    %v554 = vpop.permute.xlu0 %553
    %v556 = vmul.f32 %v538, %v554
    %v557 = vpack.c.bf16 %v556, %v556
    %559 = vrot.lane.b32.xlu0 %v557, 32
    %v560 = vpop.permute.xlu0 %559
    %v562 = vsel %vm71, %v560, 0
    %564 = vmatpush.bf16.msra.mxu0 0
    %565 = vmatpush.bf16.msra.mxu0 0
    %566 = vmatpush.bf16.msra.mxu0 0
    %567 = vmatpush.bf16.msra.mxu0 0
    %568 = vmatpush.bf16.msra.mxu0 0
    %569 = vmatpush.bf16.msra.mxu0 0
    %570 = vmatpush.bf16.msra.mxu0 %v29
    %571 = vmatpush.bf16.msra.mxu0 %v27
    %572 = vmatmul.bf16.gmra.mxu0 %v562
    %v573 = vpop.f32.mrf.mxu0
    %v574 = vadd.f32 %v97, %v573
    %v575 = vpop.f32.mrf.mxu0
    %576 = vdwg.mxu0
    %577 = vmatpush.bf16.msra.mxu0 0
    %578 = vmatpush.bf16.msra.mxu0 0
    %579 = vmatpush.bf16.msra.mxu0 0
    %580 = vmatpush.bf16.msra.mxu0 0
    %581 = vmatpush.bf16.msra.mxu0 0
    %582 = vmatpush.bf16.msra.mxu0 0
    %583 = vmatpush.bf16.msra.mxu0 %v30
    %584 = vmatpush.bf16.msra.mxu0 %v28
    %585 = vmatmul.bf16.gmra.mxu0 %v562
    %v586 = vpop.f32.mrf.mxu0
    %v587 = vadd.f32 %v98, %v586
    %v588 = vpop.f32.mrf.mxu0
    %589 = vdwg.mxu0
    %591 = vrot.lane.b32.xlu0 %v587, 48
    %v592 = vpop.permute.xlu0 %591
    %vm594 = vcmask 523648
    %595 = vst.msk [vmem:[%s2] sm:$0xff] %vm594, %v592
    %v596 = vsel %vm188, %v587, -inf
    %597 = vmax.xlane.f32.xlu0 %v596
    %v598 = vpop.xlane.xlu0 %597
    %vm599 = vcmp.eq.f32.partialorder %v587, %v598
    %v600 = vsel %vm599, %v39, 16
    %v601 = vsel %vm188, %v600, 2147483647
    %v602 = vand.u32 %v601, 65535
    %v603 = vshra.s32 %v601, 16
    %v604 = vcvt.s32.f32 %v602
    %v605 = vcvt.s32.f32 %v603
    %606 = vmin.xlane.f32.xlu0 %v605
    %v607 = vpop.xlane.xlu0 %606
    %vm608 = vcmp.eq.f32.partialorder %v605, %v607
    %v609 = vsel %vm608, %v604, inf
    %610 = vmin.xlane.f32.xlu0 %v609
    %v611 = vpop.xlane.xlu0 %610
    %v612 = vcvt.f32.s32 %v611
    %v613 = vcvt.f32.s32 %v607
    %v614 = vshll.u32 %v613, 16
    %v615 = vadd.s32 %v614, %v612
    %vm616 = vcmask 31768
    %617 = vst.msk [vmem:[#allocation2] sm:$0xff] %vm616, %v615
    %v618 = vand.u32 %v615, 1
    %vm619 = vcmp.ne.s32.totalorder %v618, 0
    %v620 = vand.u32 %v615, 2
    %vm621 = vcmp.ne.s32.totalorder %v620, 0
    %v622 = vand.u32 %v615, 4
    %vm623 = vcmp.ne.s32.totalorder %v622, 0
    %v624 = vand.u32 %v615, 8
    %vm625 = vcmp.ne.s32.totalorder %v624, 0
    %v626 = vsel %vm619, 1, 0
    %vm627 = vcmp.eq.s32.totalorder %v626, 1
    %v628 = vsel %vm627, %v222, %v223
    %v629 = vsel %vm627, %v225, %v226
    %v630 = vsel %vm627, %v228, %v229
    %v631 = vsel %vm627, %v231, %v232
    %v632 = vsel %vm627, %v234, %v235
    %v633 = vsel %vm627, %v237, %v238
    %v634 = vsel %vm627, %v240, %v241
    %v635 = vsel %vm627, %v243, %v244
    %v636 = vsel %vm621, 1, 0
    %vm637 = vcmp.eq.s32.totalorder %v636, 1
    %v638 = vsel %vm637, %v629, %v628
    %v639 = vsel %vm637, %v631, %v630
    %v640 = vsel %vm637, %v633, %v632
    %v641 = vsel %vm637, %v635, %v634
    %v642 = vsel %vm623, 1, 0
    %vm643 = vcmp.eq.s32.totalorder %v642, 1
    %v644 = vsel %vm643, %v639, %v638
    %v645 = vsel %vm643, %v641, %v640
    %v646 = vsel %vm625, 1, 0
    %vm647 = vcmp.eq.s32.totalorder %v646, 1
    %v648 = vsel %vm647, %v645, %v644
    %v649 = vadd.f32 %v648, %v574
    %v650 = vxor.u32 %v649, 2147483648
    %v651 = vmul.f32 %v650, 1.442695
    %v652 = vpow.pop %v651
    %v653 = vadd.f32 %v652, 1.0
    %v654 = vrcp.pop %v653
    %v655 = vmul.f32 %v653, %v654
    %v656 = vsub.f32 1.0, %v655
    %v657 = vmul.f32 %v654, %v656
    %v658 = vadd.f32 %v654, %v657
    %vm659 = vweird.f32 %v653
    %vm660 = vweird.f32 %v654
    %vm661 = vmor %vm659, %vm660
    %v662 = vsel %vm661, %v654, %v658
    %v663 = vand.u32 2147483647, %v653
    %vm664 = vcmp.eq.f32.partialorder %v663, 8.507059e+37
    %v665 = vand.u32 %v653, 2147483648
    %v666 = vor.u32 1.1754944e-38, %v665
    %v667 = vsel %vm664, %v666, %v662
    %v668 = vmul.f32 1.0, %v667
    %v669 = vtanh.pop %v649
    %v670 = vmul.f32 %v668, %v550
    %672 = vrot.lane.b32.xlu0 %v669, 64
    %v673 = vpop.permute.xlu0 %672
    %v675 = vmul.f32 %v668, %v673
    %677 = vrot.lane.b32.xlu0 %v675, 32
    %v678 = vpop.permute.xlu0 %677
    %v680 = vadd.f32 %v670, %v678
    %v681 = vtanh.pop %v680
    %683 = vrot.lane.b32.xlu0 %v681, 64
    %v684 = vpop.permute.xlu0 %683
    %v686 = vmul.f32 %v668, %v684
    %v687 = vpack.c.bf16 %v686, %v686
    %689 = vrot.lane.b32.xlu0 %v687, 32
    %v690 = vpop.permute.xlu0 %689
    %v692 = vsel %vm71, %v690, 0
    %694 = vmatpush.bf16.msra.mxu0 0
    %695 = vmatpush.bf16.msra.mxu0 0
    %696 = vmatpush.bf16.msra.mxu0 0
    %697 = vmatpush.bf16.msra.mxu0 0
    %698 = vmatpush.bf16.msra.mxu0 0
    %699 = vmatpush.bf16.msra.mxu0 0
    %700 = vmatpush.bf16.msra.mxu0 %v29
    %701 = vmatpush.bf16.msra.mxu0 %v27
    %702 = vmatmul.bf16.gmra.mxu0 %v692
    %v703 = vpop.f32.mrf.mxu0
    %v704 = vadd.f32 %v97, %v703
    %v705 = vpop.f32.mrf.mxu0
    %706 = vdwg.mxu0
    %707 = vmatpush.bf16.msra.mxu0 0
    %708 = vmatpush.bf16.msra.mxu0 0
    %709 = vmatpush.bf16.msra.mxu0 0
    %710 = vmatpush.bf16.msra.mxu0 0
    %711 = vmatpush.bf16.msra.mxu0 0
    %712 = vmatpush.bf16.msra.mxu0 0
    %713 = vmatpush.bf16.msra.mxu0 %v30
    %714 = vmatpush.bf16.msra.mxu0 %v28
    %715 = vmatmul.bf16.gmra.mxu0 %v692
    %v716 = vpop.f32.mrf.mxu0
    %v717 = vadd.f32 %v98, %v716
    %v718 = vpop.f32.mrf.mxu0
    %719 = vdwg.mxu0
    %721 = vrot.lane.b32.xlu0 %v717, 64
    %v722 = vpop.permute.xlu0 %721
    %vm724 = vcmask 654848
    %725 = vst.msk [vmem:[%s2] sm:$0xff] %vm724, %v722
    %v726 = vsel %vm188, %v717, -inf
    %727 = vmax.xlane.f32.xlu0 %v726
    %v728 = vpop.xlane.xlu0 %727
    %vm729 = vcmp.eq.f32.partialorder %v717, %v728
    %v730 = vsel %vm729, %v39, 16
    %v731 = vsel %vm188, %v730, 2147483647
    %v732 = vand.u32 %v731, 65535
    %v733 = vshra.s32 %v731, 16
    %v734 = vcvt.s32.f32 %v732
    %v735 = vcvt.s32.f32 %v733
    %736 = vmin.xlane.f32.xlu0 %v735
    %v737 = vpop.xlane.xlu0 %736
    %vm738 = vcmp.eq.f32.partialorder %v735, %v737
    %v739 = vsel %vm738, %v734, inf
    %740 = vmin.xlane.f32.xlu0 %v739
    %v741 = vpop.xlane.xlu0 %740
    %v742 = vcvt.f32.s32 %v741
    %v743 = vcvt.f32.s32 %v737
    %v744 = vshll.u32 %v743, 16
    %v745 = vadd.s32 %v744, %v742
    %vm746 = vcmask 39968
    %747 = vst.msk [vmem:[#allocation2] sm:$0xff] %vm746, %v745
    %v748 = vand.u32 %v745, 1
    %vm749 = vcmp.ne.s32.totalorder %v748, 0
    %v750 = vand.u32 %v745, 2
    %vm751 = vcmp.ne.s32.totalorder %v750, 0
    %v752 = vand.u32 %v745, 4
    %vm753 = vcmp.ne.s32.totalorder %v752, 0
    %v754 = vand.u32 %v745, 8
    %vm755 = vcmp.ne.s32.totalorder %v754, 0
    %v756 = vsel %vm749, 1, 0
    %vm757 = vcmp.eq.s32.totalorder %v756, 1
    %v758 = vsel %vm757, %v222, %v223
    %v759 = vsel %vm757, %v225, %v226
    %v760 = vsel %vm757, %v228, %v229
    %v761 = vsel %vm757, %v231, %v232
    %v762 = vsel %vm757, %v234, %v235
    %v763 = vsel %vm757, %v237, %v238
    %v764 = vsel %vm757, %v240, %v241
    %v765 = vsel %vm757, %v243, %v244
    %v766 = vsel %vm751, 1, 0
    %vm767 = vcmp.eq.s32.totalorder %v766, 1
    %v768 = vsel %vm767, %v759, %v758
    %v769 = vsel %vm767, %v761, %v760
    %v770 = vsel %vm767, %v763, %v762
    %v771 = vsel %vm767, %v765, %v764
    %v772 = vsel %vm753, 1, 0
    %vm773 = vcmp.eq.s32.totalorder %v772, 1
    %v774 = vsel %vm773, %v769, %v768
    %v775 = vsel %vm773, %v771, %v770
    %v776 = vsel %vm755, 1, 0
    %vm777 = vcmp.eq.s32.totalorder %v776, 1
    %v778 = vsel %vm777, %v775, %v774
    %v779 = vadd.f32 %v778, %v704
    %v780 = vxor.u32 %v779, 2147483648
    %v781 = vmul.f32 %v780, 1.442695
    %v782 = vpow.pop %v781
    %v783 = vadd.f32 %v782, 1.0
    %v784 = vrcp.pop %v783
    %v785 = vmul.f32 %v783, %v784
    %v786 = vsub.f32 1.0, %v785
    %v787 = vmul.f32 %v784, %v786
    %v788 = vadd.f32 %v784, %v787
    %vm789 = vweird.f32 %v783
    %vm790 = vweird.f32 %v784
    %vm791 = vmor %vm789, %vm790
    %v792 = vsel %vm791, %v784, %v788
    %v793 = vand.u32 2147483647, %v783
    %vm794 = vcmp.eq.f32.partialorder %v793, 8.507059e+37
    %v795 = vand.u32 %v783, 2147483648
    %v796 = vor.u32 1.1754944e-38, %v795
    %v797 = vsel %vm794, %v796, %v792
    %v798 = vmul.f32 1.0, %v797
    %v799 = vtanh.pop %v779
    %v800 = vmul.f32 %v798, %v680
    %802 = vrot.lane.b32.xlu0 %v799, 64
    %v803 = vpop.permute.xlu0 %802
    %v805 = vmul.f32 %v798, %v803
    %807 = vrot.lane.b32.xlu0 %v805, 32
    %v808 = vpop.permute.xlu0 %807
    %v810 = vadd.f32 %v800, %v808
    %v811 = vtanh.pop %v810
    %813 = vrot.lane.b32.xlu0 %v811, 64
    %v814 = vpop.permute.xlu0 %813
    %v816 = vmul.f32 %v798, %v814
    %v817 = vpack.c.bf16 %v816, %v816
    %819 = vrot.lane.b32.xlu0 %v817, 32
    %v820 = vpop.permute.xlu0 %819
    %v822 = vsel %vm71, %v820, 0
    %824 = vmatpush.bf16.msra.mxu0 0
    %825 = vmatpush.bf16.msra.mxu0 0
    %826 = vmatpush.bf16.msra.mxu0 0
    %827 = vmatpush.bf16.msra.mxu0 0
    %828 = vmatpush.bf16.msra.mxu0 0
    %829 = vmatpush.bf16.msra.mxu0 0
    %830 = vmatpush.bf16.msra.mxu0 %v29
    %831 = vmatpush.bf16.msra.mxu0 %v27
    %832 = vmatmul.bf16.gmra.mxu0 %v822
    %v833 = vpop.f32.mrf.mxu0
    %v834 = vadd.f32 %v97, %v833
    %v835 = vpop.f32.mrf.mxu0
    %836 = vdwg.mxu0
    %837 = vmatpush.bf16.msra.mxu0 0
    %838 = vmatpush.bf16.msra.mxu0 0
    %839 = vmatpush.bf16.msra.mxu0 0
    %840 = vmatpush.bf16.msra.mxu0 0
    %841 = vmatpush.bf16.msra.mxu0 0
    %842 = vmatpush.bf16.msra.mxu0 0
    %843 = vmatpush.bf16.msra.mxu0 %v30
    %844 = vmatpush.bf16.msra.mxu0 %v28
    %845 = vmatmul.bf16.gmra.mxu0 %v822
    %v846 = vpop.f32.mrf.mxu0
    %v847 = vadd.f32 %v98, %v846
    %v848 = vpop.f32.mrf.mxu0
    %849 = vdwg.mxu0
    %851 = vrot.lane.b32.xlu0 %v847, 80
    %v852 = vpop.permute.xlu0 %851
    %vm854 = vcmask 786048
    %855 = vst.msk [vmem:[%s2] sm:$0xff] %vm854, %v852
    %v856 = vsel %vm188, %v847, -inf
    %857 = vmax.xlane.f32.xlu0 %v856
    %v858 = vpop.xlane.xlu0 %857
    %vm859 = vcmp.eq.f32.partialorder %v847, %v858
    %v860 = vsel %vm859, %v39, 16
    %v861 = vsel %vm188, %v860, 2147483647
    %v862 = vand.u32 %v861, 65535
    %v863 = vshra.s32 %v861, 16
    %v864 = vcvt.s32.f32 %v862
    %v865 = vcvt.s32.f32 %v863
    %866 = vmin.xlane.f32.xlu0 %v865
    %v867 = vpop.xlane.xlu0 %866
    %vm868 = vcmp.eq.f32.partialorder %v865, %v867
    %v869 = vsel %vm868, %v864, inf
    %870 = vmin.xlane.f32.xlu0 %v869
    %v871 = vpop.xlane.xlu0 %870
    %v872 = vcvt.f32.s32 %v871
    %v873 = vcvt.f32.s32 %v867
    %v874 = vshll.u32 %v873, 16
    %v875 = vadd.s32 %v874, %v872
    %vm876 = vcmask 48168
    %877 = vst.msk [vmem:[#allocation2] sm:$0xff] %vm876, %v875
    %v878 = vand.u32 %v875, 1
    %vm879 = vcmp.ne.s32.totalorder %v878, 0
    %v880 = vand.u32 %v875, 2
    %vm881 = vcmp.ne.s32.totalorder %v880, 0
    %v882 = vand.u32 %v875, 4
    %vm883 = vcmp.ne.s32.totalorder %v882, 0
    %v884 = vand.u32 %v875, 8
    %vm885 = vcmp.ne.s32.totalorder %v884, 0
    %v886 = vsel %vm879, 1, 0
    %vm887 = vcmp.eq.s32.totalorder %v886, 1
    %v888 = vsel %vm887, %v222, %v223
    %v889 = vsel %vm887, %v225, %v226
    %v890 = vsel %vm887, %v228, %v229
    %v891 = vsel %vm887, %v231, %v232
    %v892 = vsel %vm887, %v234, %v235
    %v893 = vsel %vm887, %v237, %v238
    %v894 = vsel %vm887, %v240, %v241
    %v895 = vsel %vm887, %v243, %v244
    %v896 = vsel %vm881, 1, 0
    %vm897 = vcmp.eq.s32.totalorder %v896, 1
    %v898 = vsel %vm897, %v889, %v888
    %v899 = vsel %vm897, %v891, %v890
    %v900 = vsel %vm897, %v893, %v892
    %v901 = vsel %vm897, %v895, %v894
    %v902 = vsel %vm883, 1, 0
    %vm903 = vcmp.eq.s32.totalorder %v902, 1
    %v904 = vsel %vm903, %v899, %v898
    %v905 = vsel %vm903, %v901, %v900
    %v906 = vsel %vm885, 1, 0
    %vm907 = vcmp.eq.s32.totalorder %v906, 1
    %v908 = vsel %vm907, %v905, %v904
    %v909 = vadd.f32 %v908, %v834
    %v910 = vxor.u32 %v909, 2147483648
    %v911 = vmul.f32 %v910, 1.442695
    %v912 = vpow.pop %v911
    %v913 = vadd.f32 %v912, 1.0
    %v914 = vrcp.pop %v913
    %v915 = vmul.f32 %v913, %v914
    %v916 = vsub.f32 1.0, %v915
    %v917 = vmul.f32 %v914, %v916
    %v918 = vadd.f32 %v914, %v917
    %vm919 = vweird.f32 %v913
    %vm920 = vweird.f32 %v914
    %vm921 = vmor %vm919, %vm920
    %v922 = vsel %vm921, %v914, %v918
    %v923 = vand.u32 2147483647, %v913
    %vm924 = vcmp.eq.f32.partialorder %v923, 8.507059e+37
    %v925 = vand.u32 %v913, 2147483648
    %v926 = vor.u32 1.1754944e-38, %v925
    %v927 = vsel %vm924, %v926, %v922
    %v928 = vmul.f32 1.0, %v927
    %v929 = vtanh.pop %v909
    %v930 = vmul.f32 %v928, %v810
    %932 = vrot.lane.b32.xlu0 %v929, 64
    %v933 = vpop.permute.xlu0 %932
    %v935 = vmul.f32 %v928, %v933
    %937 = vrot.lane.b32.xlu0 %v935, 32
    %v938 = vpop.permute.xlu0 %937
    %v940 = vadd.f32 %v930, %v938
    %v941 = vtanh.pop %v940
    %943 = vrot.lane.b32.xlu0 %v941, 64
    %v944 = vpop.permute.xlu0 %943
    %v946 = vmul.f32 %v928, %v944
    %v947 = vpack.c.bf16 %v946, %v946
    %949 = vrot.lane.b32.xlu0 %v947, 32
    %v950 = vpop.permute.xlu0 %949
    %v952 = vsel %vm71, %v950, 0
    %954 = vmatpush.bf16.msra.mxu0 0
    %955 = vmatpush.bf16.msra.mxu0 0
    %956 = vmatpush.bf16.msra.mxu0 0
    %957 = vmatpush.bf16.msra.mxu0 0
    %958 = vmatpush.bf16.msra.mxu0 0
    %959 = vmatpush.bf16.msra.mxu0 0
    %960 = vmatpush.bf16.msra.mxu0 %v29
    %961 = vmatpush.bf16.msra.mxu0 %v27
    %962 = vmatmul.bf16.gmra.mxu0 %v952
    %v963 = vpop.f32.mrf.mxu0
    %v964 = vadd.f32 %v97, %v963
    %v965 = vpop.f32.mrf.mxu0
    %966 = vdwg.mxu0
    %967 = vmatpush.bf16.msra.mxu0 0
    %968 = vmatpush.bf16.msra.mxu0 0
    %969 = vmatpush.bf16.msra.mxu0 0
    %970 = vmatpush.bf16.msra.mxu0 0
    %971 = vmatpush.bf16.msra.mxu0 0
    %972 = vmatpush.bf16.msra.mxu0 0
    %973 = vmatpush.bf16.msra.mxu0 %v30
    %974 = vmatpush.bf16.msra.mxu0 %v28
    %975 = vmatmul.bf16.gmra.mxu0 %v952
    %v976 = vpop.f32.mrf.mxu0
    %v977 = vadd.f32 %v98, %v976
    %v978 = vpop.f32.mrf.mxu0
    %979 = vdwg.mxu0
    %981 = vrot.lane.b32.xlu0 %v977, 96
    %v982 = vpop.permute.xlu0 %981
    %vm984 = vcmask 917248
    %985 = vst.msk [vmem:[%s2] sm:$0xff] %vm984, %v982
    %v986 = vsel %vm188, %v977, -inf
    %987 = vmax.xlane.f32.xlu0 %v986
    %v988 = vpop.xlane.xlu0 %987
    %vm989 = vcmp.eq.f32.partialorder %v977, %v988
    %v990 = vsel %vm989, %v39, 16
    %v991 = vsel %vm188, %v990, 2147483647
    %v992 = vand.u32 %v991, 65535
    %v993 = vshra.s32 %v991, 16
    %v994 = vcvt.s32.f32 %v992
    %v995 = vcvt.s32.f32 %v993
    %996 = vmin.xlane.f32.xlu0 %v995
    %v997 = vpop.xlane.xlu0 %996
    %vm998 = vcmp.eq.f32.partialorder %v995, %v997
    %v999 = vsel %vm998, %v994, inf
    %1000 = vmin.xlane.f32.xlu0 %v999
    %v1001 = vpop.xlane.xlu0 %1000
    %v1002 = vcvt.f32.s32 %v1001
    %v1003 = vcvt.f32.s32 %v997
    %v1004 = vshll.u32 %v1003, 16
    %v1005 = vadd.s32 %v1004, %v1002
    %vm1006 = vcmask 56368
    %1007 = vst.msk [vmem:[#allocation2] sm:$0xff] %vm1006, %v1005
    %v1008 = vand.u32 %v1005, 1
    %vm1009 = vcmp.ne.s32.totalorder %v1008, 0
    %v1010 = vand.u32 %v1005, 2
    %vm1011 = vcmp.ne.s32.totalorder %v1010, 0
    %v1012 = vand.u32 %v1005, 4
    %vm1013 = vcmp.ne.s32.totalorder %v1012, 0
    %v1014 = vand.u32 %v1005, 8
    %vm1015 = vcmp.ne.s32.totalorder %v1014, 0
    %v1016 = vsel %vm1009, 1, 0
    %vm1017 = vcmp.eq.s32.totalorder %v1016, 1
    %v1018 = vsel %vm1017, %v222, %v223
    %v1019 = vsel %vm1017, %v225, %v226
    %v1020 = vsel %vm1017, %v228, %v229
    %v1021 = vsel %vm1017, %v231, %v232
    %v1022 = vsel %vm1017, %v234, %v235
    %v1023 = vsel %vm1017, %v237, %v238
    %v1024 = vsel %vm1017, %v240, %v241
    %v1025 = vsel %vm1017, %v243, %v244
    %v1026 = vsel %vm1011, 1, 0
    %vm1027 = vcmp.eq.s32.totalorder %v1026, 1
    %v1028 = vsel %vm1027, %v1019, %v1018
    %v1029 = vsel %vm1027, %v1021, %v1020
    %v1030 = vsel %vm1027, %v1023, %v1022
    %v1031 = vsel %vm1027, %v1025, %v1024
    %v1032 = vsel %vm1013, 1, 0
    %vm1033 = vcmp.eq.s32.totalorder %v1032, 1
    %v1034 = vsel %vm1033, %v1029, %v1028
    %v1035 = vsel %vm1033, %v1031, %v1030
    %v1036 = vsel %vm1015, 1, 0
    %vm1037 = vcmp.eq.s32.totalorder %v1036, 1
    %v1038 = vsel %vm1037, %v1035, %v1034
    %v1039 = vadd.f32 %v1038, %v964
    %v1040 = vxor.u32 %v1039, 2147483648
    %v1041 = vmul.f32 %v1040, 1.442695
    %v1042 = vpow.pop %v1041
    %v1043 = vadd.f32 %v1042, 1.0
    %v1044 = vrcp.pop %v1043
    %v1045 = vmul.f32 %v1043, %v1044
    %v1046 = vsub.f32 1.0, %v1045
    %v1047 = vmul.f32 %v1044, %v1046
    %v1048 = vadd.f32 %v1044, %v1047
    %vm1049 = vweird.f32 %v1043
    %vm1050 = vweird.f32 %v1044
    %vm1051 = vmor %vm1049, %vm1050
    %v1052 = vsel %vm1051, %v1044, %v1048
    %v1053 = vand.u32 2147483647, %v1043
    %vm1054 = vcmp.eq.f32.partialorder %v1053, 8.507059e+37
    %v1055 = vand.u32 %v1043, 2147483648
    %v1056 = vor.u32 1.1754944e-38, %v1055
    %v1057 = vsel %vm1054, %v1056, %v1052
    %v1058 = vmul.f32 1.0, %v1057
    %v1059 = vtanh.pop %v1039
    %v1060 = vmul.f32 %v1058, %v940
    %1062 = vrot.lane.b32.xlu0 %v1059, 64
    %v1063 = vpop.permute.xlu0 %1062
    %v1065 = vmul.f32 %v1058, %v1063
    %1067 = vrot.lane.b32.xlu0 %v1065, 32
    %v1068 = vpop.permute.xlu0 %1067
    %v1070 = vadd.f32 %v1060, %v1068
    %v1071 = vtanh.pop %v1070
    %1073 = vrot.lane.b32.xlu0 %v1071, 64
    %v1074 = vpop.permute.xlu0 %1073
    %v1076 = vmul.f32 %v1058, %v1074
    %v1077 = vpack.c.bf16 %v1076, %v1076
    %1079 = vrot.lane.b32.xlu0 %v1077, 32
    %v1080 = vpop.permute.xlu0 %1079
    %v1082 = vsel %vm71, %v1080, 0
    %1084 = vmatpush.bf16.msra.mxu0 0
    %1085 = vmatpush.bf16.msra.mxu0 0
    %1086 = vmatpush.bf16.msra.mxu0 0
    %1087 = vmatpush.bf16.msra.mxu0 0
    %1088 = vmatpush.bf16.msra.mxu0 0
    %1089 = vmatpush.bf16.msra.mxu0 0
    %1090 = vmatpush.bf16.msra.mxu0 %v30
    %1091 = vmatpush.bf16.msra.mxu0 %v28
    %1092 = vmatmul.bf16.gmra.mxu0 %v1082
    %v1093 = vpop.f32.mrf.mxu0
    %v1094 = vadd.f32 %v98, %v1093
    %v1095 = vpop.f32.mrf.mxu0
    %1096 = vdwg.mxu0
    %1098 = vrot.lane.b32.xlu0 %v1094, 112
    %v1099 = vpop.permute.xlu0 %1098
    %vm1101 = vcmask 1048448
    %1102 = vst.msk [vmem:[%s2] sm:$0xff] %vm1101, %v1099
    %v1103 = vsel %vm188, %v1094, -inf
    %1104 = vmax.xlane.f32.xlu0 %v1103
    %v1105 = vpop.xlane.xlu0 %1104
    %vm1106 = vcmp.eq.f32.partialorder %v1094, %v1105
    %v1107 = vsel %vm1106, %v39, 16
    %v1108 = vsel %vm188, %v1107, 2147483647
    %v1109 = vand.u32 %v1108, 65535
    %v1110 = vshra.s32 %v1108, 16
    %v1111 = vcvt.s32.f32 %v1109
    %v1112 = vcvt.s32.f32 %v1110
    %1113 = vmin.xlane.f32.xlu0 %v1112
    %v1114 = vpop.xlane.xlu0 %1113
    %vm1115 = vcmp.eq.f32.partialorder %v1112, %v1114
    %v1116 = vsel %vm1115, %v1111, inf
    %1117 = vmin.xlane.f32.xlu0 %v1116
    %v1118 = vpop.xlane.xlu0 %1117
    %v1119 = vcvt.f32.s32 %v1118
    %v1120 = vcvt.f32.s32 %v1114
    %v1121 = vshll.u32 %v1120, 16
    %v1122 = vadd.s32 %v1121, %v1119
    %vm1123 = vcmask 64568
    %1124 = vst.msk [vmem:[#allocation2] sm:$0xff] %vm1123, %v1122
    // Predicated region
    $region10: #{discrete_sender_forward.1} parent=1 // pred_check
      _
    $region11: #{discrete_sender_forward.1} parent=1 // pred_check_branch
      %1126 = sbr.rel (0) target = $region13
    $region12: #{discrete_sender_forward.1} parent=1 // pred_region
      _
    $region13: #{discrete_sender_forward.1} parent=1 // pred_fallthru
      _
    // Predicated region
    $region14: #{discrete_sender_forward.1} parent=1 // pred_check
      _
    $region15: #{discrete_sender_forward.1} parent=1 // pred_check_branch
      %1128 = sbr.rel (0) target = $region17
    $region16: #{discrete_sender_forward.1} parent=1 // pred_region
      %1130 = vsyncadd [#allocation3], 0
      %s1132 = sshll.u32 [#allocation2], 4
      %s1133 = int_to_ptr.vmem [resolvable:$true] %s1132
      %s1134 = sshll.u32 %s3, 4
      %s1135 = int_to_ptr.hbm [resolvable:$true] %s1134
      %1137 = dma.vmem_to_hbm [thread:$0]  %s1133, 128, %s1135, [#allocation3]
    $region17: #{discrete_sender_forward.1} parent=1 // pred_fallthru
      _
    // Predicated region
    $region18: #{discrete_sender_forward.1} parent=1 // pred_check
      _
    $region19: #{discrete_sender_forward.1} parent=1 // pred_check_branch
      %1139 = sbr.rel (0) target = $region21
    $region20: #{discrete_sender_forward.1} parent=1 // pred_region
      _
    $region21: #{discrete_sender_forward.1} parent=1 // pred_fallthru
      _
    // Predicated region
    $region22: #{discrete_sender_forward.1} parent=1 // pred_check
      _
    $region23: #{discrete_sender_forward.1} parent=1 // pred_check_branch
      %1141 = sbr.rel (0) target = $region25
    $region24: #{discrete_sender_forward.1} parent=1 // pred_region
      %1143 = dma.done [#allocation3], 128
    $region25: #{discrete_sender_forward.1} parent=1 // pred_fallthru
      _
    %1144 = vsyncpa [#allocation3], 1

</llo_original>
